<compile_context>
chip_gen: v7x
topology: tpu7x:2x2x1
jax: 0.10.0
libtpu: 0.0.40
codegen_flags: <defaults>
</compile_context>

<pallas_src>
import functools

import numpy as np
import jax
import jax.numpy as jnp
from jax.experimental import pallas as pl
from jax.experimental.pallas import tpu as pltpu

BN_EPS = 1e-5
LANE = 128        # feature dims padded to multiples of the TPU lane width
SUB = 16          # row counts padded to multiples of the bf16 sublane tile
ROW_BLOCK = 256   # max rows per tile (used for both the M and K roles)


def _round_up(x, m):
    return (x + m - 1) // m * m


def _pad2(x, rows, cols):
    return jnp.pad(x, ((0, rows - x.shape[0]), (0, cols - x.shape[1])))


def _pad1(x, n):
    return jnp.pad(x, (0, n - x.shape[0]))


# ----------------------------------------------------------------------------
# Fused SAGE layer kernel:
#   mean-aggregation (A @ h, K-tiled with f32 accumulator)
#   + fused self/neighbor (+ layer-0 residual Linear) projection
#   + folded BatchNorm bias + ReLU + residual add.
# Outputs: (collect activation, h for the next layer).
# ----------------------------------------------------------------------------
def _sage_layer_kernel(a_ref, hsrc_ref, hdst_ref, w_ref, b_ref,
                       collect_ref, hout_ref, acc_ref, *, n_k, layer0):
    k = pl.program_id(1)

    @pl.when(k == 0)
    def _():
        acc_ref[...] = jnp.zeros_like(acc_ref)

    # mean neighbor aggregation as a dense matmul (A is row-normalized)
    acc_ref[...] += jnp.dot(a_ref[...], hsrc_ref[...],
                            preferred_element_type=jnp.float32)

    @pl.when(k == n_k - 1)
    def _():
        h_dst = hdst_ref[...]                                   # (tm, d_in) bf16
        h_neigh = acc_ref[...].astype(h_dst.dtype)              # (tm, d_in)
        x = jnp.concatenate([h_dst, h_neigh], axis=-1)          # (tm, 2*d_in)
        z = jnp.dot(x, w_ref[...],
                    preferred_element_type=jnp.float32) + b_ref[...]
        n_h = hout_ref.shape[1]
        if layer0:
            # columns [0:n_h) = folded SAGEConv+BN, [n_h:) = residual Linear
            relu = jnp.maximum(z[:, :n_h], 0.0)
            h_out = relu + z[:, n_h:]
        else:
            relu = jnp.maximum(z, 0.0)
            h_out = relu + h_dst.astype(jnp.float32)            # Identity residual
        collect_ref[...] = relu.astype(collect_ref.dtype)
        hout_ref[...] = h_out.astype(hout_ref.dtype)


def sage_layer(a_p, h_p, w_fused, bias, *, tm, tk, layer0, out_dtype):
    n_dst_p = a_p.shape[0]
    n_src_p, d_in_p = h_p.shape
    n_cols = w_fused.shape[1]
    n_h = n_cols // 2 if layer0 else n_cols
    grid = (n_dst_p // tm, n_src_p // tk)
    kernel = functools.partial(_sage_layer_kernel, n_k=grid[1], layer0=layer0)
    out_block = pl.BlockSpec((tm, n_h), lambda i, k: (i, 0))
    return pl.pallas_call(
        kernel,
        out_shape=(jax.ShapeDtypeStruct((n_dst_p, n_h), out_dtype),
                   jax.ShapeDtypeStruct((n_dst_p, n_h), out_dtype)),
        grid_spec=pltpu.PrefetchScalarGridSpec(
            num_scalar_prefetch=0,
            grid=grid,
            in_specs=[
                pl.BlockSpec((tm, tk), lambda i, k: (i, k)),          # A tile
                pl.BlockSpec((tk, d_in_p), lambda i, k: (k, 0)),      # h (src rows)
                pl.BlockSpec((tm, d_in_p), lambda i, k: (i, 0)),      # h (dst prefix)
                pl.BlockSpec((2 * d_in_p, n_cols), lambda i, k: (0, 0)),  # fused W (resident)
                pl.BlockSpec((1, n_cols), lambda i, k: (0, 0)),       # fused bias
            ],
            out_specs=(out_block, out_block),
            scratch_shapes=[pltpu.VMEM((tm, d_in_p), jnp.float32)],
        ),
        compiler_params=pltpu.CompilerParams(
            dimension_semantics=("parallel", "arbitrary")),
    )(a_p, h_p, h_p, w_fused, bias)


# ----------------------------------------------------------------------------
# Fused MLP head (Linear -> Linear, no activation since end_up_with_fc=True).
# Consumes the collect pieces directly (no concatenate); W0 is row-blocked to
# match the padded piece widths.
# ----------------------------------------------------------------------------
def _mlp_kernel(*refs, piece_dims):
    n_p = len(piece_dims)
    x_refs = refs[:n_p]
    w0_ref, b0_ref, w1_ref, b1_ref, out_ref = refs[n_p:n_p + 5]
    z = jnp.zeros((x_refs[0].shape[0], w0_ref.shape[1]), jnp.float32)
    off = 0
    for x_ref, d in zip(x_refs, piece_dims):
        z = z + jnp.dot(x_ref[...], w0_ref[off:off + d, :],
                        preferred_element_type=jnp.float32)
        off += d
    z = z + b0_ref[...]
    out = jnp.dot(z.astype(w1_ref.dtype), w1_ref[...],
                  preferred_element_type=jnp.float32) + b1_ref[...]
    out_ref[...] = out.astype(out_ref.dtype)


def mlp_head(pieces, w0, b0, w1, b1, *, piece_dims, tm):
    n_rows = pieces[0].shape[0]
    c2_p = w0.shape[1]
    c_p = w1.shape[1]
    grid = (n_rows // tm,)
    kernel = functools.partial(_mlp_kernel, piece_dims=tuple(piece_dims))
    in_specs = ([pl.BlockSpec((tm, d), lambda i: (i, 0)) for d in piece_dims] + [
        pl.BlockSpec(w0.shape, lambda i: (0, 0)),
        pl.BlockSpec((1, c2_p), lambda i: (0, 0)),
        pl.BlockSpec(w1.shape, lambda i: (0, 0)),
        pl.BlockSpec((1, c_p), lambda i: (0, 0)),
    ])
    return pl.pallas_call(
        kernel,
        out_shape=jax.ShapeDtypeStruct((n_rows, c_p), jnp.float32),
        grid_spec=pltpu.PrefetchScalarGridSpec(
            num_scalar_prefetch=0, grid=grid,
            in_specs=in_specs,
            out_specs=pl.BlockSpec((tm, c_p), lambda i: (i, 0))),
        compiler_params=pltpu.CompilerParams(dimension_semantics=("parallel",)),
    )(*pieces, w0, b0, w1, b1)


# ----------------------------------------------------------------------------
# Host-side parameter preparation: BN folding, weight stacking, padding, bf16.
# ----------------------------------------------------------------------------
def prepare_params(params, in_feats, n_hidden, n_classes, n_layers,
                   dtype=jnp.bfloat16):
    n_h_p = _round_up(n_hidden, LANE)
    layers = []
    for l in range(n_layers):
        d_in = in_feats if l == 0 else n_hidden
        d_in_p = _round_up(d_in, LANE)
        # fold eval-mode BatchNorm1d into the conv weights + bias
        scale = params["bn_gamma"][l] * jax.lax.rsqrt(params["bn_var"][l] + BN_EPS)
        w_self = params["w_self"][l] * scale
        w_neigh = params["w_neigh"][l] * scale
        bn_bias = params["bn_beta"][l] - params["bn_mean"][l] * scale
        if l == 0:
            top = jnp.concatenate([_pad2(w_self, d_in_p, n_h_p),
                                   _pad2(params["res_w"], d_in_p, n_h_p)], axis=1)
            bot = jnp.concatenate([_pad2(w_neigh, d_in_p, n_h_p),
                                   jnp.zeros((d_in_p, n_h_p), jnp.float32)], axis=1)
            w = jnp.concatenate([top, bot], axis=0)
            b = jnp.concatenate([_pad1(bn_bias, n_h_p), _pad1(params["res_b"], n_h_p)])
        else:
            w = jnp.concatenate([_pad2(w_self, d_in_p, n_h_p),
                                 _pad2(w_neigh, d_in_p, n_h_p)], axis=0)
            b = _pad1(bn_bias, n_h_p)
        layers.append(dict(w=w.astype(dtype),
                           b=b[None, :].astype(jnp.float32),
                           layer0=(l == 0)))

    c2_p = _round_up(2 * n_classes, LANE)
    c_p = _round_up(n_classes, LANE)
    piece_dims = [in_feats] + [n_hidden] * n_layers
    piece_dims_p = [_round_up(d, LANE) for d in piece_dims]
    chunks, off = [], 0
    for d, dp in zip(piece_dims, piece_dims_p):
        chunks.append(_pad2(params["mlp_w0"][off:off + d], dp, c2_p))
        off += d
    return dict(
        layers=layers,
        mlp_w0=jnp.concatenate(chunks, axis=0).astype(dtype),
        mlp_b0=_pad1(params["mlp_b0"], c2_p)[None, :].astype(jnp.float32),
        mlp_w1=_pad2(params["mlp_w1"], c2_p, c_p).astype(dtype),
        mlp_b1=_pad1(params["mlp_b1"], c_p)[None, :].astype(jnp.float32),
        piece_dims_p=tuple(piece_dims_p),
        n_classes=n_classes,
    )


# ----------------------------------------------------------------------------
# Full SAGE forward (padding / dtype plumbing in XLA, compute in Pallas)
# ----------------------------------------------------------------------------
def sage_forward(prep, feats, adjs, num_output_nodes, dtype=jnp.bfloat16):
    n_layers = len(adjs)
    counts = [feats.shape[0]] + [a.shape[0] for a in adjs]
    # one row-block size per "hop" serves both the M (dst) and K (src) roles,
    # so every padded row count divides its tile exactly.
    blk = [min(ROW_BLOCK, _round_up(c, SUB)) for c in counts]
    cnt_p = [_round_up(c, b) for c, b in zip(counts, blk)]
    for l in range(n_layers):
        # DGL MFG convention: dst nodes are a prefix of the src node ordering.
        assert counts[l + 1] <= counts[l] and cnt_p[l + 1] <= cnt_p[l]

    d_feat_p = _round_up(feats.shape[1], LANE)
    h = _pad2(feats, cnt_p[0], d_feat_p).astype(dtype)   # dropout -> identity

    n_out_rows = cnt_p[n_layers]
    collect = [h[:n_out_rows]]
    for l in range(n_layers):
        lay = prep["layers"][l]
        a_p = _pad2(adjs[l], cnt_p[l + 1], cnt_p[l]).astype(dtype)
        col, h = sage_layer(a_p, h, lay["w"], lay["b"],
                            tm=blk[l + 1], tk=blk[l],
                            layer0=lay["layer0"], out_dtype=dtype)
        collect.append(col[:n_out_rows])

    out_p = mlp_head(collect, prep["mlp_w0"], prep["mlp_b0"],
                     prep["mlp_w1"], prep["mlp_b1"],
                     piece_dims=prep["piece_dims_p"], tm=blk[n_layers])
    return out_p[:num_output_nodes, :prep["n_classes"]]


# ----------------------------------------------------------------------------
# Pure-JAX f32 reference (mirrors the PyTorch module in eval mode)
# ----------------------------------------------------------------------------
def sage_forward_ref(params, feats, adjs, num_output_nodes):
    h = feats
    collect = [h[:num_output_nodes]]
    for l, a in enumerate(adjs):
        n_dst = a.shape[0]
        h_res = h[:n_dst]
        z = h[:n_dst] @ params["w_self"][l] + (a @ h) @ params["w_neigh"][l]
        scale = params["bn_gamma"][l] / jnp.sqrt(params["bn_var"][l] + BN_EPS)
        z = (z - params["bn_mean"][l]) * scale + params["bn_beta"][l]
        h_act = jnp.maximum(z, 0.0)
        collect.append(h_act[:num_output_nodes])
        if l == 0:
            h = h_act + (h_res @ params["res_w"] + params["res_b"])
        else:
            h = h_act + h_res
    x = jnp.concatenate(collect, axis=-1)
    x = x @ params["mlp_w0"] + params["mlp_b0"]
    return x @ params["mlp_w1"] + params["mlp_b1"]


def make_params(key, in_feats, n_hidden, n_classes, n_layers):
    ks = iter(jax.random.split(key, 8 * n_layers + 8))

    def rnd(shape, scale=0.1):
        return (scale * jax.random.normal(next(ks), shape)).astype(jnp.float32)

    w_self, w_neigh = [], []
    bn_gamma, bn_beta, bn_mean, bn_var = [], [], [], []
    for l in range(n_layers):
        d_in = in_feats if l == 0 else n_hidden
        w_self.append(rnd((d_in, n_hidden)))
        w_neigh.append(rnd((d_in, n_hidden)))
        bn_gamma.append(1.0 + rnd((n_hidden,)))
        bn_beta.append(rnd((n_hidden,)))
        bn_mean.append(rnd((n_hidden,)))
        bn_var.append(1.0 + jnp.abs(rnd((n_hidden,), 0.2)))

    mlp_in = in_feats + n_hidden * n_layers
    return dict(
        w_self=w_self, w_neigh=w_neigh,
        bn_gamma=bn_gamma, bn_beta=bn_beta, bn_mean=bn_mean, bn_var=bn_var,
        res_w=rnd((in_feats, n_hidden)), res_b=rnd((n_hidden,)),
        mlp_w0=rnd((mlp_in, 2 * n_classes)), mlp_b0=rnd((2 * n_classes,)),
        mlp_w1=rnd((2 * n_classes, n_classes)), mlp_b1=rnd((n_classes,)),
    )


if __name__ == "__main__":
    in_feats, n_hidden, n_classes, n_layers = 128, 96, 48, 3
    # message-flow-graph node counts per hop: src of block0 ... dst of last block
    node_counts = [1024, 512, 197, 64]
    num_output_nodes = node_counts[-1]

    key = jax.random.PRNGKey(0)
    k_feat, k_adj, k_par = jax.random.split(key, 3)

    feats = jax.random.normal(k_feat, (node_counts[0], in_feats), dtype=jnp.float32)

    # dense row-normalized adjacencies (mean aggregation), guarded against
    # zero-degree rows
    adjs = []
    adj_keys = jax.random.split(k_adj, n_layers)
    for l in range(n_layers):
        n_dst, n_src = node_counts[l + 1], node_counts[l]
        raw = jax.random.uniform(adj_keys[l], (n_dst, n_src), dtype=jnp.float32)
        adjs.append(raw / jnp.maximum(jnp.sum(raw, axis=-1, keepdims=True), 1e-12))

    params = make_params(k_par, in_feats, n_hidden, n_classes, n_layers)
    prep = prepare_params(params, in_feats, n_hidden, n_classes, n_layers)

    out = sage_forward(prep, feats, adjs, num_output_nodes)
    out = jax.block_until_ready(out)
    assert out.shape == (num_output_nodes, n_classes)

    ref = jax.block_until_ready(
        sage_forward_ref(params, feats, adjs, num_output_nodes))
    rel_err = float(jnp.linalg.norm(out - ref) / jnp.linalg.norm(ref))
    assert np.isfinite(rel_err) and rel_err < 0.1, f"mismatch: rel_err={rel_err}"
    print("KERNEL_OK")
</pallas_src>

<mosaic_0001>
module attributes {stable_mosaic.version = 11 : i64} {
  func.func @_sage_layer_kernel(%arg0: i32, %arg1: i32, %arg2: memref<256x256xbf16, #tpu.memory_space<vmem>>, %arg3: memref<256x128xbf16, #tpu.memory_space<vmem>>, %arg4: memref<256x128xbf16, #tpu.memory_space<vmem>>, %arg5: memref<256x256xbf16, #tpu.memory_space<vmem>>, %arg6: memref<1x256xf32, #tpu.memory_space<vmem>>, %arg7: memref<256x128xbf16, #tpu.memory_space<vmem>>, %arg8: memref<256x128xbf16, #tpu.memory_space<vmem>>, %arg9: memref<256x128xf32, #tpu.memory_space<vmem>>) attributes {dimension_semantics = [#tpu.dimension_semantics<parallel>, #tpu.dimension_semantics<arbitrary>], iteration_bounds = array<i64: 2, 4>, scalar_prefetch = 0 : i64, scratch_operands = 1 : i64, tpu.core_type = #tpu.core_type<tc>, window_params = [{transform_indices = @transform_0, window_bounds = array<i64: 256, 256>}, {transform_indices = @transform_1, window_bounds = array<i64: 256, 128>}, {transform_indices = @transform_2, window_bounds = array<i64: 256, 128>}, {pipeline_mode = #tpu.pipeline_mode<synchronous>, transform_indices = @transform_3, window_bounds = array<i64: 256, 256>}, {pipeline_mode = #tpu.pipeline_mode<synchronous>, transform_indices = @transform_4, window_bounds = array<i64: 1, 256>}, {transform_indices = @transform_5, window_bounds = array<i64: 256, 128>}, {transform_indices = @transform_6, window_bounds = array<i64: 256, 128>}]} {
    %c0_i32 = arith.constant 0 : i32
    %0 = arith.cmpi eq, %arg1, %c0_i32 : i32
    %1 = arith.extui %0 : i1 to i32
    %c0_i32_0 = arith.constant 0 : i32
    %2 = arith.cmpi ne, %1, %c0_i32_0 : i32
    scf.if %2 {
      %cst_9 = arith.constant 0.000000e+00 : f32
      %12 = vector.broadcast %cst_9 : f32 to vector<256x128xf32>
      %c0_10 = arith.constant 0 : index
      %c0_11 = arith.constant 0 : index
      %13 = vector.load %arg9[%c0_10, %c0_11] : memref<256x128xf32, #tpu.memory_space<vmem>>, vector<256x128xf32>
      tpu.vector_store %arg9[%c0_10, %c0_11], %12 {strides = array<i32>} : memref<256x128xf32, #tpu.memory_space<vmem>>, vector<256x128xf32>,
    } else {
    }
    %c0 = arith.constant 0 : index
    %c0_1 = arith.constant 0 : index
    %3 = vector.load %arg9[%c0, %c0_1] : memref<256x128xf32, #tpu.memory_space<vmem>>, vector<256x128xf32>
    %c0_2 = arith.constant 0 : index
    %c0_3 = arith.constant 0 : index
    %4 = vector.load %arg2[%c0_2, %c0_3] : memref<256x256xbf16, #tpu.memory_space<vmem>>, vector<256x256xbf16>
    %c0_4 = arith.constant 0 : index
    %c0_5 = arith.constant 0 : index
    %5 = vector.load %arg3[%c0_4, %c0_5] : memref<256x128xbf16, #tpu.memory_space<vmem>>, vector<256x128xbf16>
    %cst = arith.constant dense<0.000000e+00> : vector<256x128xf32>
    %6 = tpu.matmul %4, %5, %cst {dimension_numbers = #tpu.dot_dimension_numbers<[1], [0], [0], [1], [0, 0, 1, 1], [], []>} : vector<256x256xbf16>, vector<256x128xbf16>, vector<256x128xf32> -> vector<256x128xf32>
    %7 = arith.addf %3, %6 : vector<256x128xf32>
    %c0_6 = arith.constant 0 : index
    %c0_7 = arith.constant 0 : index
    %8 = vector.load %arg9[%c0_6, %c0_7] : memref<256x128xf32, #tpu.memory_space<vmem>>, vector<256x128xf32>
    tpu.vector_store %arg9[%c0_6, %c0_7], %7 {strides = array<i32>} : memref<256x128xf32, #tpu.memory_space<vmem>>, vector<256x128xf32>,
    %c3_i32 = arith.constant 3 : i32
    %9 = arith.cmpi eq, %arg1, %c3_i32 : i32
    %10 = arith.extui %9 : i1 to i32
    %c0_i32_8 = arith.constant 0 : i32
    %11 = arith.cmpi ne, %10, %c0_i32_8 : i32
    scf.if %11 {
      %c0_9 = arith.constant 0 : index
      %c0_10 = arith.constant 0 : index
      %12 = vector.load %arg4[%c0_9, %c0_10] : memref<256x128xbf16, #tpu.memory_space<vmem>>, vector<256x128xbf16>
      %c0_11 = arith.constant 0 : index
      %c0_12 = arith.constant 0 : index
      %13 = vector.load %arg9[%c0_11, %c0_12] : memref<256x128xf32, #tpu.memory_space<vmem>>, vector<256x128xf32>
      %14 = arith.truncf %13 : vector<256x128xf32> to vector<256x128xbf16>
      %15 = tpu.concatenate %12, %14 in 1 : vector<256x128xbf16>, vector<256x128xbf16> -> vector<256x256xbf16>
      %c0_13 = arith.constant 0 : index
      %c0_14 = arith.constant 0 : index
      %16 = vector.load %arg5[%c0_13, %c0_14] : memref<256x256xbf16, #tpu.memory_space<vmem>>, vector<256x256xbf16>
      %cst_15 = arith.constant dense<0.000000e+00> : vector<256x256xf32>
      %17 = tpu.matmul %15, %16, %cst_15 {dimension_numbers = #tpu.dot_dimension_numbers<[1], [0], [0], [1], [0, 0, 1, 1], [], []>} : vector<256x256xbf16>, vector<256x256xbf16>, vector<256x256xf32> -> vector<256x256xf32>
      %c0_16 = arith.constant 0 : index
      %c0_17 = arith.constant 0 : index
      %18 = vector.load %arg6[%c0_16, %c0_17] : memref<1x256xf32, #tpu.memory_space<vmem>>, vector<1x256xf32>
      %19 = vector.broadcast %18 : vector<1x256xf32> to vector<256x256xf32>
      %20 = arith.addf %17, %19 : vector<256x256xf32>
      %21 = vector.extract_strided_slice %20 {offsets = [0, 0], sizes = [256, 128], strides = [1, 1]} : vector<256x256xf32> to vector<256x128xf32>
      %cst_18 = arith.constant 0.000000e+00 : f32
      %22 = vector.broadcast %cst_18 : f32 to vector<256x128xf32>
      %23 = arith.maximumf %21, %22 : vector<256x128xf32>
      %24 = vector.extract_strided_slice %20 {offsets = [0, 128], sizes = [256, 128], strides = [1, 1]} : vector<256x256xf32> to vector<256x128xf32>
      %25 = arith.addf %23, %24 : vector<256x128xf32>
      %26 = arith.truncf %23 : vector<256x128xf32> to vector<256x128xbf16>
      %c0_19 = arith.constant 0 : index
      %c0_20 = arith.constant 0 : index
      %27 = vector.load %arg7[%c0_19, %c0_20] : memref<256x128xbf16, #tpu.memory_space<vmem>>, vector<256x128xbf16>
      tpu.vector_store %arg7[%c0_19, %c0_20], %26 {strides = array<i32>} : memref<256x128xbf16, #tpu.memory_space<vmem>>, vector<256x128xbf16>,
      %28 = arith.truncf %25 : vector<256x128xf32> to vector<256x128xbf16>
      %c0_21 = arith.constant 0 : index
      %c0_22 = arith.constant 0 : index
      %29 = vector.load %arg8[%c0_21, %c0_22] : memref<256x128xbf16, #tpu.memory_space<vmem>>, vector<256x128xbf16>
      tpu.vector_store %arg8[%c0_21, %c0_22], %28 {strides = array<i32>} : memref<256x128xbf16, #tpu.memory_space<vmem>>, vector<256x128xbf16>,
    } else {
    }
    return
  }
  func.func @transform_0(%arg0: i32, %arg1: i32) -> (i32, i32) {
    %c0_i32 = arith.constant 0 : i32
    return %arg0, %arg1 : i32, i32
  }
  func.func @transform_1(%arg0: i32, %arg1: i32) -> (i32, i32) {
    %c0_i32 = arith.constant 0 : i32
    %c0_i32_0 = arith.constant 0 : i32
    return %arg1, %c0_i32 : i32, i32
  }
  func.func @transform_2(%arg0: i32, %arg1: i32) -> (i32, i32) {
    %c0_i32 = arith.constant 0 : i32
    %c0_i32_0 = arith.constant 0 : i32
    return %arg0, %c0_i32 : i32, i32
  }
  func.func @transform_3(%arg0: i32, %arg1: i32) -> (i32, i32) {
    %c0_i32 = arith.constant 0 : i32
    %c0_i32_0 = arith.constant 0 : i32
    %c0_i32_1 = arith.constant 0 : i32
    return %c0_i32, %c0_i32_0 : i32, i32
  }
  func.func @transform_4(%arg0: i32, %arg1: i32) -> (i32, i32) {
    %c0_i32 = arith.constant 0 : i32
    %c0_i32_0 = arith.constant 0 : i32
    %c0_i32_1 = arith.constant 0 : i32
    return %c0_i32, %c0_i32_0 : i32, i32
  }
  func.func @transform_5(%arg0: i32, %arg1: i32) -> (i32, i32) {
    %c0_i32 = arith.constant 0 : i32
    %c0_i32_0 = arith.constant 0 : i32
    return %arg0, %c0_i32 : i32, i32
  }
  func.func @transform_6(%arg0: i32, %arg1: i32) -> (i32, i32) {
    %c0_i32 = arith.constant 0 : i32
    %c0_i32_0 = arith.constant 0 : i32
    return %arg0, %c0_i32 : i32, i32
  }
}

</mosaic_0001>

<llo_original>
// kernel: tpu_custom_call.1
$region0: #{tpu_custom_call.1}
  #allocation0 [shape = 'u32[]', space=smem, size = 0x4, offset = 0x4, fixed_abs, tag = 'smem constant byte address 0x4 - core index']
  #allocation1 [shape = 'u32[144,128]{1,0:T(1,128)}', space=vmem, size = 0x12000, scoped, tag = 'internal scratch']
  #allocation2 [shape = 'f32[256,128]{1,0:T(8,128)}', space=vmem, size = 0x20000, scoped, tag = 'scratch operand']
  %s0 = inlined_call_operand.hbm [shape: bf16[512,1024], index: 0, kind: input, shape index: {}]
  %s1 = inlined_call_operand.hbm [shape: bf16[1024,128], index: 1, kind: input, shape index: {}]
  %s2 = inlined_call_operand.hbm [shape: bf16[1024,128], index: 2, kind: input, shape index: {}]
  %s3 = inlined_call_operand.hbm [shape: bf16[256,256], index: 3, kind: input, shape index: {}]
  %s4 = inlined_call_operand.vmem [shape: f32[1,256], index: 4, kind: input, shape index: {}]
  %s5 = inlined_call_operand.hbm [shape: bf16[512,128], index: 5, kind: output, shape index: {0}]
  %s6 = inlined_call_operand.hbm [shape: bf16[512,128], index: 6, kind: output, shape index: {1}]
  %7 = xla_tuple %s5, %s6
  %s8 = sld [smem:[#allocation0]]
  $region85: #{tpu_custom_call.1} parent=0
    _
  %s10 = ssub.s32 1, %s8
  %s11 = scalar_select 0, %s10, %s8
  $region1: #{tpu_custom_call.1} parent=0
    #allocation3 [shape = 'u8[262144]{0}', space=vmem, size = 0x40000, scoped, tag = 'input window, operand 0']
    #allocation4 [shape = 's32[2]{0}', space=sflag, size = 0x8, scoped, tag = 'scoped memory for tpu_custom_call.1']
    #allocation5 [shape = 's32[2]{0}', space=sflag, size = 0x8, scoped, tag = 'scoped memory for tpu_custom_call.1']
    #allocation6 [shape = 'u8[131072]{0}', space=vmem, size = 0x20000, scoped, tag = 'input window, operand 1']
    #allocation7 [shape = 's32[2]{0}', space=sflag, size = 0x8, scoped, tag = 'scoped memory for tpu_custom_call.1']
    #allocation8 [shape = 'u8[131072]{0}', space=vmem, size = 0x20000, scoped, tag = 'input window, operand 2']
    #allocation9 [shape = 'u8[131072]{0}', space=vmem, size = 0x20000, scoped, tag = 'input window, operand 3, single buffered']
    #allocation10 [shape = 's32[1]{0}', space=sflag, size = 0x4, scoped, tag = 'scoped memory for tpu_custom_call.1']
    #allocation11 [shape = 'u8[131072]{0}', space=vmem, size = 0x20000, scoped, tag = 'output window, operand 0']
    #allocation12 [shape = 'u8[131072]{0}', space=vmem, size = 0x20000, scoped, tag = 'output window, operand 1']
    #allocation13 [shape = 's32[2]{0}', space=sflag, size = 0x8, scoped, tag = 'scoped memory for tpu_custom_call.1']
    %12 = vsyncpa [#allocation4], 0
    %s13 = scalar_lea.sflag [#allocation4], 1
    %14 = vsyncpa %s13, 0
    %15 = vsyncpa [#allocation7], 0
    %s16 = scalar_lea.sflag [#allocation7], 1
    %17 = vsyncpa %s16, 0
    %18 = vsyncpa [#allocation10], 0
    %19 = vsyncpa [#allocation5], 0
    %s20 = scalar_lea.sflag [#allocation5], 1
    %21 = vsyncpa %s20, 0
    %22 = vsyncpa [#allocation13], 0
    %s23 = scalar_lea.sflag [#allocation13], 1
    %24 = vsyncpa %s23, 0
    loop: start=0, step=1, limit=10
    $region2: #{tpu_custom_call.1} parent=1 // loop_pre_header
      _
    $region3: #{tpu_custom_call.1} parent=1 // loop_header
      %s26 = sphi 0, %s30
      %p27 = scmp.ge.s32.totalorder %s26, 10
      %s33 = sphi 0, %s45
      %s34 = sphi 0, %s41
      %s35 = sphi 0, %s33
      %s36 = sphi 0, %s34
      %s37 = sphi 0, %s35
      %s38 = sphi 0, %s36
      %s50 = sphi 0, %s52
      %s53 = sphi 0, %s50
      %s54 = sphi 0, %s53
      %s70 = sphi 0, %s54
      %s76 = sphi 0, %s78
      %s79 = sphi 0, %s76
      %s80 = sphi 0, %s79
      %s96 = sphi 0, %s80
      %s102 = sphi 0, %s104
      %s105 = sphi 0, %s102
      %s106 = sphi 0, %s105
      %s122 = sphi 0, %s106
      %s126 = sphi 0, %s126
      %s128 = sphi 0, %s126
      %s129 = sphi 0, %s128
      %s143 = sphi 0, %s129
      %s147 = sphi 0, %s147
      %s149 = sphi 0, %s147
      %s150 = sphi 0, %s149
      %s164 = sphi 0, %s150
      %s170 = sphi 0, %s172
      %s173 = sphi 0, %s170
      %s174 = sphi 0, %s173
      %s190 = sphi 0, %s174
      %s196 = sphi 0, %s198
      %s199 = sphi 0, %s196
      %s200 = sphi 0, %s199
      %s216 = sphi 0, %s200
    $region4: #{tpu_custom_call.1} parent=1 // loop_header_branch
      %29 = sbr.rel (%p27) target = $region8
    $region5: #{tpu_custom_call.1} parent=1 // loop_body
      %s31 = ssub.s32 %s26, 1
      %s32 = ssub.s32 %s26, 2
      %s39 = sadd.s32 1, %s34
      %p40 = scmp.ge.s32.totalorder %s39, 4
      %s41 = scalar_select %p40, 0, %s39
      %s42 = sadd.s32 1, %s33
      %s43 = scalar_select %p40, %s42, %s33
      %p44 = scmp.ge.s32.totalorder %s43, 2
      %s45 = scalar_select %p44, 0, %s43
      %s46 = ssub.s32 %s33, %s45
      %s47 = ssub.s32 %s34, %s41
      %s48 = sor.u32 %s46, %s47
      %p49 = scmp.eq.s32.totalorder %s48, 0
      %s51 = sadd.s32 %s50, 1
      %s52 = scalar_select %p49, %s50, %s51
      %p55 = pneg %p49
      %p56 = scmp.eq.s32.totalorder %s26, 7
      %p57 = por %p55, %p56
      %p58 = scmp.ne.s32.totalorder %s50, %s53
      %p59 = scmp.eq.s32.totalorder %s26, 0
      %p60 = por %p58, %p59
      %p61 = scmp.ne.s32.totalorder %s50, %s53
      %p62 = scmp.eq.s32.totalorder %s31, 7
      %p63 = por %p61, %p62
      %p64 = scmp.ne.s32.totalorder %s53, %s54
      %p65 = scmp.eq.s32.totalorder %s31, 0
      %p66 = por %p64, %p65
      %p67 = scmp.ne.s32.totalorder %s53, %s54
      %p68 = scmp.eq.s32.totalorder %s32, 7
      %p69 = por %p67, %p68
      %p71 = scmp.ne.s32.totalorder %s54, %s70
      %p72 = scmp.eq.s32.totalorder %s32, 0
      %p73 = por %p71, %p72
      %s74 = ssub.s32 %s34, %s41
      %p75 = scmp.eq.s32.totalorder %s74, 0
      %s77 = sadd.s32 %s76, 1
      %s78 = scalar_select %p75, %s76, %s77
      %p81 = pneg %p75
      %p82 = scmp.eq.s32.totalorder %s26, 7
      %p83 = por %p81, %p82
      %p84 = scmp.ne.s32.totalorder %s76, %s79
      %p85 = scmp.eq.s32.totalorder %s26, 0
      %p86 = por %p84, %p85
      %p87 = scmp.ne.s32.totalorder %s76, %s79
      %p88 = scmp.eq.s32.totalorder %s31, 7
      %p89 = por %p87, %p88
      %p90 = scmp.ne.s32.totalorder %s79, %s80
      %p91 = scmp.eq.s32.totalorder %s31, 0
      %p92 = por %p90, %p91
      %p93 = scmp.ne.s32.totalorder %s79, %s80
      %p94 = scmp.eq.s32.totalorder %s32, 7
      %p95 = por %p93, %p94
      %p97 = scmp.ne.s32.totalorder %s80, %s96
      %p98 = scmp.eq.s32.totalorder %s32, 0
      %p99 = por %p97, %p98
      %s100 = ssub.s32 %s33, %s45
      %p101 = scmp.eq.s32.totalorder %s100, 0
      %s103 = sadd.s32 %s102, 1
      %s104 = scalar_select %p101, %s102, %s103
      %p107 = pneg %p101
      %p108 = scmp.eq.s32.totalorder %s26, 7
      %p109 = por %p107, %p108
      %p110 = scmp.ne.s32.totalorder %s102, %s105
      %p111 = scmp.eq.s32.totalorder %s26, 0
      %p112 = por %p110, %p111
      %p113 = scmp.ne.s32.totalorder %s102, %s105
      %p114 = scmp.eq.s32.totalorder %s31, 7
      %p115 = por %p113, %p114
      %p116 = scmp.ne.s32.totalorder %s105, %s106
      %p117 = scmp.eq.s32.totalorder %s31, 0
      %p118 = por %p116, %p117
      %p119 = scmp.ne.s32.totalorder %s105, %s106
      %p120 = scmp.eq.s32.totalorder %s32, 7
      %p121 = por %p119, %p120
      %p123 = scmp.ne.s32.totalorder %s106, %s122
      %p124 = scmp.eq.s32.totalorder %s32, 0
      %p125 = por %p123, %p124
      %s127 = sadd.s32 %s126, 1
      %p130 = scmp.eq.s32.totalorder %s26, 7
      %p131 = scmp.ne.s32.totalorder %s126, %s128
      %p132 = scmp.eq.s32.totalorder %s26, 0
      %p133 = por %p131, %p132
      %p134 = scmp.ne.s32.totalorder %s126, %s128
      %p135 = scmp.eq.s32.totalorder %s31, 7
      %p136 = por %p134, %p135
      %p137 = scmp.ne.s32.totalorder %s128, %s129
      %p138 = scmp.eq.s32.totalorder %s31, 0
      %p139 = por %p137, %p138
      %p140 = scmp.ne.s32.totalorder %s128, %s129
      %p141 = scmp.eq.s32.totalorder %s32, 7
      %p142 = por %p140, %p141
      %p144 = scmp.ne.s32.totalorder %s129, %s143
      %p145 = scmp.eq.s32.totalorder %s32, 0
      %p146 = por %p144, %p145
      %s148 = sadd.s32 %s147, 1
      %p151 = scmp.eq.s32.totalorder %s26, 7
      %p152 = scmp.ne.s32.totalorder %s147, %s149
      %p153 = scmp.eq.s32.totalorder %s26, 0
      %p154 = por %p152, %p153
      %p155 = scmp.ne.s32.totalorder %s147, %s149
      %p156 = scmp.eq.s32.totalorder %s31, 7
      %p157 = por %p155, %p156
      %p158 = scmp.ne.s32.totalorder %s149, %s150
      %p159 = scmp.eq.s32.totalorder %s31, 0
      %p160 = por %p158, %p159
      %p161 = scmp.ne.s32.totalorder %s149, %s150
      %p162 = scmp.eq.s32.totalorder %s32, 7
      %p163 = por %p161, %p162
      %p165 = scmp.ne.s32.totalorder %s150, %s164
      %p166 = scmp.eq.s32.totalorder %s32, 0
      %p167 = por %p165, %p166
      %s168 = ssub.s32 %s33, %s45
      %p169 = scmp.eq.s32.totalorder %s168, 0
      %s171 = sadd.s32 %s170, 1
      %s172 = scalar_select %p169, %s170, %s171
      %p175 = pneg %p169
      %p176 = scmp.eq.s32.totalorder %s26, 7
      %p177 = por %p175, %p176
      %p178 = scmp.ne.s32.totalorder %s170, %s173
      %p179 = scmp.eq.s32.totalorder %s26, 0
      %p180 = por %p178, %p179
      %p181 = scmp.ne.s32.totalorder %s170, %s173
      %p182 = scmp.eq.s32.totalorder %s31, 7
      %p183 = por %p181, %p182
      %p184 = scmp.ne.s32.totalorder %s173, %s174
      %p185 = scmp.eq.s32.totalorder %s31, 0
      %p186 = por %p184, %p185
      %p187 = scmp.ne.s32.totalorder %s173, %s174
      %p188 = scmp.eq.s32.totalorder %s32, 7
      %p189 = por %p187, %p188
      %p191 = scmp.ne.s32.totalorder %s174, %s190
      %p192 = scmp.eq.s32.totalorder %s32, 0
      %p193 = por %p191, %p192
      %s194 = ssub.s32 %s33, %s45
      %p195 = scmp.eq.s32.totalorder %s194, 0
      %s197 = sadd.s32 %s196, 1
      %s198 = scalar_select %p195, %s196, %s197
      %p201 = pneg %p195
      %p202 = scmp.eq.s32.totalorder %s26, 7
      %p203 = por %p201, %p202
      %p204 = scmp.ne.s32.totalorder %s196, %s199
      %p205 = scmp.eq.s32.totalorder %s26, 0
      %p206 = por %p204, %p205
      %p207 = scmp.ne.s32.totalorder %s196, %s199
      %p208 = scmp.eq.s32.totalorder %s31, 7
      %p209 = por %p207, %p208
      %p210 = scmp.ne.s32.totalorder %s199, %s200
      %p211 = scmp.eq.s32.totalorder %s31, 0
      %p212 = por %p210, %p211
      %p213 = scmp.ne.s32.totalorder %s199, %s200
      %p214 = scmp.eq.s32.totalorder %s32, 7
      %p215 = por %p213, %p214
      %p217 = scmp.ne.s32.totalorder %s200, %s216
      %p218 = scmp.eq.s32.totalorder %s32, 0
      %p219 = por %p217, %p218
      %p220 = scmp.le.s32.totalorder 1, %s26
      %p221 = scmp.lt.s32.totalorder %s26, 9
      %p222 = pnand %p220, %p221
      %p223 = pneg %p222
      // Predicated region
      $region9: #{tpu_custom_call.1} parent=5 // pred_check
        _
      $region10: #{tpu_custom_call.1} parent=5 // pred_check_branch
        %225 = sbr.rel (%p222) target = $region12
      $region11: #{tpu_custom_call.1} parent=5 // pred_region
        %s226 = ssub.s32 %s26, 1
        // Predicated region
        $region13: #{tpu_custom_call.1} parent=11 // pred_check
          %p227 = pneg %p139
        $region14: #{tpu_custom_call.1} parent=11 // pred_check_branch
          %229 = sbr.rel (%p227) target = $region16
        $region15: #{tpu_custom_call.1} parent=11 // pred_region
          %s231 = ssub.s32 4096, 4096
          %232 = vsyncadd [#allocation10], %s231
          %s233 = sshll.u32 [#allocation9], 4
          %s234 = int_to_ptr.vmem [resolvable:$true] %s233
          %239 = dma.hbm_to_vmem [thread:$0]  %s3, 4096, %s234, [#allocation10], 128, 128, 8
        $region16: #{tpu_custom_call.1} parent=11 // pred_fallthru
          _
        // Predicated region
        $region17: #{tpu_custom_call.1} parent=11 // pred_check
          %p240 = pneg %p160
        $region18: #{tpu_custom_call.1} parent=11 // pred_check_branch
          %242 = sbr.rel (%p240) target = $region20
        $region19: #{tpu_custom_call.1} parent=11 // pred_region
          _
        $region20: #{tpu_custom_call.1} parent=11 // pred_fallthru
          _
      $region12: #{tpu_custom_call.1} parent=5 // pred_fallthru
        _
      %p243 = scmp.lt.s32.totalorder %s26, 8
      // Predicated region
      $region21: #{tpu_custom_call.1} parent=5 // pred_check
        %p244 = pneg %p243
      $region22: #{tpu_custom_call.1} parent=5 // pred_check_branch
        %246 = sbr.rel (%p244) target = $region24
      $region23: #{tpu_custom_call.1} parent=5 // pred_region
        // Predicated region
        $region25: #{tpu_custom_call.1} parent=23 // pred_check
          %p247 = pneg %p60
        $region26: #{tpu_custom_call.1} parent=23 // pred_check_branch
          %249 = sbr.rel (%p247) target = $region28
        $region27: #{tpu_custom_call.1} parent=23 // pred_region
          %s250 = sand.u32 %s50, 1
          %s251 = scalar_lea.sflag [#allocation4], %s250
          %s252 = sand.u32 %s50, 1
          %s253 = smul.addr %s252, 256
          %s254 = scalar_lea.vmem [#allocation3], %s253
          %s255 = smul.u32 32, %s33
          %s256 = smul.u32 2, %s34
          %s258 = ssub.s32 4096, 4096
          %259 = vsyncadd %s251, %s258
          %s260 = smul.addr %s255, 8
          %s261 = sadd.s32 %s256, %s260
          %s262 = smul.addr %s261, 64
          %s263 = scalar_lea.hbm %s0, %s262
          %s264 = sshll.u32 %s254, 4
          %s265 = int_to_ptr.vmem [resolvable:$true] %s264
          %270 = dma.hbm_to_vmem [thread:$0]  %s263, 4096, %s265, %s251, 512, 128, 8
        $region28: #{tpu_custom_call.1} parent=23 // pred_fallthru
          _
        // Predicated region
        $region29: #{tpu_custom_call.1} parent=23 // pred_check
          %p271 = pneg %p86
        $region30: #{tpu_custom_call.1} parent=23 // pred_check_branch
          %273 = sbr.rel (%p271) target = $region32
        $region31: #{tpu_custom_call.1} parent=23 // pred_region
          %s274 = sand.u32 %s26, 1
          %s275 = scalar_lea.sflag [#allocation7], %s274
          %s276 = sand.u32 %s76, 1
          %s277 = smul.addr %s276, 128
          %s278 = scalar_lea.vmem [#allocation6], %s277
          %s279 = smul.u32 32, %s34
          %s281 = ssub.s32 2048, 2048
          %282 = vsyncadd %s275, %s281
          %s283 = smul.addr %s279, 64
          %s284 = scalar_lea.hbm %s1, %s283
          %s285 = sshll.u32 %s278, 4
          %s286 = int_to_ptr.vmem [resolvable:$true] %s285
          %291 = dma.hbm_to_vmem [thread:$0]  %s284, 2048, %s286, %s275, 64, 64, 4
        $region32: #{tpu_custom_call.1} parent=23 // pred_fallthru
          _
        // Predicated region
        $region33: #{tpu_custom_call.1} parent=23 // pred_check
          %p292 = pneg %p112
        $region34: #{tpu_custom_call.1} parent=23 // pred_check_branch
          %294 = sbr.rel (%p292) target = $region36
        $region35: #{tpu_custom_call.1} parent=23 // pred_region
          %s295 = sand.u32 %s26, 1
          %s296 = scalar_lea.sflag [#allocation7], %s295
          %s297 = sand.u32 %s102, 1
          %s298 = smul.addr %s297, 128
          %s299 = scalar_lea.vmem [#allocation8], %s298
          %s300 = smul.u32 32, %s33
          %s302 = ssub.s32 2048, 2048
          %303 = vsyncadd %s296, %s302
          %s304 = smul.addr %s300, 64
          %s305 = scalar_lea.hbm %s2, %s304
          %s306 = sshll.u32 %s299, 4
          %s307 = int_to_ptr.vmem [resolvable:$true] %s306
          %312 = dma.hbm_to_vmem [thread:$0]  %s305, 2048, %s307, %s296, 64, 64, 4
        $region36: #{tpu_custom_call.1} parent=23 // pred_fallthru
          _
      $region24: #{tpu_custom_call.1} parent=5 // pred_fallthru
        _
      %p313 = scmp.le.s32.totalorder 1, %s26
      %p314 = scmp.lt.s32.totalorder %s26, 9
      %p315 = pnand %p313, %p314
      %p316 = pneg %p315
      // Predicated region
      $region37: #{tpu_custom_call.1} parent=5 // pred_check
        _
      $region38: #{tpu_custom_call.1} parent=5 // pred_check_branch
        %318 = sbr.rel (%p315) target = $region40
      $region39: #{tpu_custom_call.1} parent=5 // pred_region
        %s319 = ssub.s32 %s26, 1
        %s320 = sand.u32 %s53, 1
        %s321 = scalar_lea.sflag [#allocation4], %s320
        %s322 = sand.u32 %s53, 1
        %s323 = smul.addr %s322, 256
        %s324 = scalar_lea.vmem [#allocation3], %s323
        // Predicated region
        $region41: #{tpu_custom_call.1} parent=39 // pred_check
          %p325 = pneg %p66
        $region42: #{tpu_custom_call.1} parent=39 // pred_check_branch
          %327 = sbr.rel (%p325) target = $region44
        $region43: #{tpu_custom_call.1} parent=39 // pred_region
          %328 = dma.done %s321, 4096
        $region44: #{tpu_custom_call.1} parent=39 // pred_fallthru
          _
        %s329 = sand.u32 %s31, 1
        %s330 = scalar_lea.sflag [#allocation7], %s329
        %s331 = sand.u32 %s79, 1
        %s332 = smul.addr %s331, 128
        %s333 = scalar_lea.vmem [#allocation6], %s332
        // Predicated region
        $region45: #{tpu_custom_call.1} parent=39 // pred_check
          %p334 = pneg %p92
        $region46: #{tpu_custom_call.1} parent=39 // pred_check_branch
          %336 = sbr.rel (%p334) target = $region48
        $region47: #{tpu_custom_call.1} parent=39 // pred_region
          %337 = dma.done %s330, 2048
        $region48: #{tpu_custom_call.1} parent=39 // pred_fallthru
          _
        %s338 = sand.u32 %s31, 1
        %s339 = scalar_lea.sflag [#allocation7], %s338
        %s340 = sand.u32 %s105, 1
        %s341 = smul.addr %s340, 128
        %s342 = scalar_lea.vmem [#allocation8], %s341
        // Predicated region
        $region49: #{tpu_custom_call.1} parent=39 // pred_check
          %p343 = pneg %p118
        $region50: #{tpu_custom_call.1} parent=39 // pred_check_branch
          %345 = sbr.rel (%p343) target = $region52
        $region51: #{tpu_custom_call.1} parent=39 // pred_region
          %346 = dma.done %s339, 2048
        $region52: #{tpu_custom_call.1} parent=39 // pred_fallthru
          _
        // Predicated region
        $region53: #{tpu_custom_call.1} parent=39 // pred_check
          %p347 = pneg %p139
        $region54: #{tpu_custom_call.1} parent=39 // pred_check_branch
          %349 = sbr.rel (%p347) target = $region56
        $region55: #{tpu_custom_call.1} parent=39 // pred_region
          %350 = dma.done [#allocation10], 4096
        $region56: #{tpu_custom_call.1} parent=39 // pred_fallthru
          _
        %s351 = sand.u32 %s53, 1
        %s352 = scalar_lea.sflag [#allocation4], %s351
        %s353 = sand.u32 %s53, 1
        %s354 = smul.addr %s353, 256
        %s355 = scalar_lea.vmem [#allocation3], %s354
        %p356 = pneg %p66
        %p357 = pneg %p63
        %s358 = sand.u32 %s31, 1
        %s359 = scalar_lea.sflag [#allocation7], %s358
        %s360 = sand.u32 %s79, 1
        %s361 = smul.addr %s360, 128
        %s362 = scalar_lea.vmem [#allocation6], %s361
        %p363 = pneg %p92
        %p364 = pneg %p89
        %s365 = sand.u32 %s31, 1
        %s366 = scalar_lea.sflag [#allocation7], %s365
        %s367 = sand.u32 %s105, 1
        %s368 = smul.addr %s367, 128
        %s369 = scalar_lea.vmem [#allocation8], %s368
        %p370 = pneg %p118
        %p371 = pneg %p115
        %p372 = pneg %p139
        %p373 = pneg %p136
        %p374 = pneg %p160
        %p375 = pneg %p157
        %p376 = pneg %p186
        %p377 = pneg %p183
        %s378 = sand.u32 %s173, 1
        %s379 = scalar_lea.sflag [#allocation5], %s378
        %s380 = sand.u32 %s173, 1
        %s381 = smul.addr %s380, 128
        %s382 = scalar_lea.vmem [#allocation11], %s381
        %p383 = pneg %p212
        %p384 = pneg %p209
        %s385 = sand.u32 %s199, 1
        %s386 = scalar_lea.sflag [#allocation13], %s385
        %s387 = sand.u32 %s199, 1
        %s388 = smul.addr %s387, 128
        %s389 = scalar_lea.vmem [#allocation12], %s388
        %s390 = smul.u32 32, %s35
        %s391 = smul.u32 2, %s36
        %s392 = smul.u32 32, %s36
        %s393 = smul.u32 32, %s35
        %s394 = smul.u32 32, %s35
        %s395 = smul.u32 32, %s35
        %p397 = scmp.eq.s32.totalorder %s36, 0
        // Predicated region
        $region57: #{tpu_custom_call.1} parent=39 // pred_check
          %p398 = pneg %p397
        $region58: #{tpu_custom_call.1} parent=39 // pred_check_branch
          %400 = sbr.rel (%p398) target = $region60
        $region59: #{tpu_custom_call.1} parent=39 // pred_region
          %401 = vst [vmem:[#allocation2] sm:$0xff] 0.0
          %402 = vst [vmem:[#allocation2 + $0x8] sm:$0xff] 0.0
          %403 = vst [vmem:[#allocation2 + $0x10] sm:$0xff] 0.0
          %404 = vst [vmem:[#allocation2 + $0x18] sm:$0xff] 0.0
          %405 = vst [vmem:[#allocation2 + $0x20] sm:$0xff] 0.0
          %406 = vst [vmem:[#allocation2 + $0x28] sm:$0xff] 0.0
          %407 = vst [vmem:[#allocation2 + $0x30] sm:$0xff] 0.0
          %408 = vst [vmem:[#allocation2 + $0x38] sm:$0xff] 0.0
          %409 = vst [vmem:[#allocation2 + $0x40] sm:$0xff] 0.0
          %410 = vst [vmem:[#allocation2 + $0x48] sm:$0xff] 0.0
          %411 = vst [vmem:[#allocation2 + $0x50] sm:$0xff] 0.0
          %412 = vst [vmem:[#allocation2 + $0x58] sm:$0xff] 0.0
          %413 = vst [vmem:[#allocation2 + $0x60] sm:$0xff] 0.0
          %414 = vst [vmem:[#allocation2 + $0x68] sm:$0xff] 0.0
          %415 = vst [vmem:[#allocation2 + $0x70] sm:$0xff] 0.0
          %416 = vst [vmem:[#allocation2 + $0x78] sm:$0xff] 0.0
          %417 = vst [vmem:[#allocation2 + $0x80] sm:$0xff] 0.0
          %418 = vst [vmem:[#allocation2 + $0x88] sm:$0xff] 0.0
          %419 = vst [vmem:[#allocation2 + $0x90] sm:$0xff] 0.0
          %420 = vst [vmem:[#allocation2 + $0x98] sm:$0xff] 0.0
          %421 = vst [vmem:[#allocation2 + $0xa0] sm:$0xff] 0.0
          %422 = vst [vmem:[#allocation2 + $0xa8] sm:$0xff] 0.0
          %423 = vst [vmem:[#allocation2 + $0xb0] sm:$0xff] 0.0
          %424 = vst [vmem:[#allocation2 + $0xb8] sm:$0xff] 0.0
          %425 = vst [vmem:[#allocation2 + $0xc0] sm:$0xff] 0.0
          %426 = vst [vmem:[#allocation2 + $0xc8] sm:$0xff] 0.0
          %427 = vst [vmem:[#allocation2 + $0xd0] sm:$0xff] 0.0
          %428 = vst [vmem:[#allocation2 + $0xd8] sm:$0xff] 0.0
          %429 = vst [vmem:[#allocation2 + $0xe0] sm:$0xff] 0.0
          %430 = vst [vmem:[#allocation2 + $0xe8] sm:$0xff] 0.0
          %431 = vst [vmem:[#allocation2 + $0xf0] sm:$0xff] 0.0
          %432 = vst [vmem:[#allocation2 + $0xf8] sm:$0xff] 0.0
        $region60: #{tpu_custom_call.1} parent=39 // pred_fallthru
          _
        %v433 = vld [vmem:[#allocation2] sm:$0xff]
        %v434 = vld [vmem:[#allocation2 + $0x8] sm:$0xff]
        %v435 = vld [vmem:[#allocation2 + $0x10] sm:$0xff]
        %v436 = vld [vmem:[#allocation2 + $0x18] sm:$0xff]
        %v437 = vld [vmem:[#allocation2 + $0x20] sm:$0xff]
        %v438 = vld [vmem:[#allocation2 + $0x28] sm:$0xff]
        %v439 = vld [vmem:[#allocation2 + $0x30] sm:$0xff]
        %v440 = vld [vmem:[#allocation2 + $0x38] sm:$0xff]
        %v441 = vld [vmem:[#allocation2 + $0x40] sm:$0xff]
        %v442 = vld [vmem:[#allocation2 + $0x48] sm:$0xff]
        %v443 = vld [vmem:[#allocation2 + $0x50] sm:$0xff]
        %v444 = vld [vmem:[#allocation2 + $0x58] sm:$0xff]
        %v445 = vld [vmem:[#allocation2 + $0x60] sm:$0xff]
        %v446 = vld [vmem:[#allocation2 + $0x68] sm:$0xff]
        %v447 = vld [vmem:[#allocation2 + $0x70] sm:$0xff]
        %v448 = vld [vmem:[#allocation2 + $0x78] sm:$0xff]
        %v449 = vld [vmem:[#allocation2 + $0x80] sm:$0xff]
        %v450 = vld [vmem:[#allocation2 + $0x88] sm:$0xff]
        %v451 = vld [vmem:[#allocation2 + $0x90] sm:$0xff]
        %v452 = vld [vmem:[#allocation2 + $0x98] sm:$0xff]
        %v453 = vld [vmem:[#allocation2 + $0xa0] sm:$0xff]
        %v454 = vld [vmem:[#allocation2 + $0xa8] sm:$0xff]
        %v455 = vld [vmem:[#allocation2 + $0xb0] sm:$0xff]
        %v456 = vld [vmem:[#allocation2 + $0xb8] sm:$0xff]
        %v457 = vld [vmem:[#allocation2 + $0xc0] sm:$0xff]
        %v458 = vld [vmem:[#allocation2 + $0xc8] sm:$0xff]
        %v459 = vld [vmem:[#allocation2 + $0xd0] sm:$0xff]
        %v460 = vld [vmem:[#allocation2 + $0xd8] sm:$0xff]
        %v461 = vld [vmem:[#allocation2 + $0xe0] sm:$0xff]
        %v462 = vld [vmem:[#allocation2 + $0xe8] sm:$0xff]
        %v463 = vld [vmem:[#allocation2 + $0xf0] sm:$0xff]
        %v464 = vld [vmem:[#allocation2 + $0xf8] sm:$0xff]
        %v465 = vld [vmem:[%s324] sm:$0xff]
        %v466 = vld [vmem:[%s324 + $0x8] sm:$0xff]
        %v467 = vld [vmem:[%s324 + $0x10] sm:$0xff]
        %v468 = vld [vmem:[%s324 + $0x18] sm:$0xff]
        %v469 = vld [vmem:[%s324 + $0x20] sm:$0xff]
        %v470 = vld [vmem:[%s324 + $0x28] sm:$0xff]
        %v471 = vld [vmem:[%s324 + $0x30] sm:$0xff]
        %v472 = vld [vmem:[%s324 + $0x38] sm:$0xff]
        %v473 = vld [vmem:[%s324 + $0x40] sm:$0xff]
        %v474 = vld [vmem:[%s324 + $0x48] sm:$0xff]
        %v475 = vld [vmem:[%s324 + $0x50] sm:$0xff]
        %v476 = vld [vmem:[%s324 + $0x58] sm:$0xff]
        %v477 = vld [vmem:[%s324 + $0x60] sm:$0xff]
        %v478 = vld [vmem:[%s324 + $0x68] sm:$0xff]
        %v479 = vld [vmem:[%s324 + $0x70] sm:$0xff]
        %v480 = vld [vmem:[%s324 + $0x78] sm:$0xff]
        %v481 = vld [vmem:[%s324 + $0x80] sm:$0xff]
        %v482 = vld [vmem:[%s324 + $0x88] sm:$0xff]
        %v483 = vld [vmem:[%s324 + $0x90] sm:$0xff]
        %v484 = vld [vmem:[%s324 + $0x98] sm:$0xff]
        %v485 = vld [vmem:[%s324 + $0xa0] sm:$0xff]
        %v486 = vld [vmem:[%s324 + $0xa8] sm:$0xff]
        %v487 = vld [vmem:[%s324 + $0xb0] sm:$0xff]
        %v488 = vld [vmem:[%s324 + $0xb8] sm:$0xff]
        %v489 = vld [vmem:[%s324 + $0xc0] sm:$0xff]
        %v490 = vld [vmem:[%s324 + $0xc8] sm:$0xff]
        %v491 = vld [vmem:[%s324 + $0xd0] sm:$0xff]
        %v492 = vld [vmem:[%s324 + $0xd8] sm:$0xff]
        %v493 = vld [vmem:[%s324 + $0xe0] sm:$0xff]
        %v494 = vld [vmem:[%s324 + $0xe8] sm:$0xff]
        %v495 = vld [vmem:[%s324 + $0xf0] sm:$0xff]
        %v496 = vld [vmem:[%s324 + $0xf8] sm:$0xff]
        %v497 = vld [vmem:[%s333] sm:$0xf]
        %v498 = vld [vmem:[%s333 + $0x4] sm:$0xf]
        %v499 = vld [vmem:[%s333 + $0x8] sm:$0xf]
        %v500 = vld [vmem:[%s333 + $0xc] sm:$0xf]
        %v501 = vld [vmem:[%s333 + $0x10] sm:$0xf]
        %v502 = vld [vmem:[%s333 + $0x14] sm:$0xf]
        %v503 = vld [vmem:[%s333 + $0x18] sm:$0xf]
        %v504 = vld [vmem:[%s333 + $0x1c] sm:$0xf]
        %v505 = vld [vmem:[%s333 + $0x20] sm:$0xf]
        %v506 = vld [vmem:[%s333 + $0x24] sm:$0xf]
        %v507 = vld [vmem:[%s333 + $0x28] sm:$0xf]
        %v508 = vld [vmem:[%s333 + $0x2c] sm:$0xf]
        %v509 = vld [vmem:[%s333 + $0x30] sm:$0xf]
        %v510 = vld [vmem:[%s333 + $0x34] sm:$0xf]
        %v511 = vld [vmem:[%s333 + $0x38] sm:$0xf]
        %v512 = vld [vmem:[%s333 + $0x3c] sm:$0xf]
        %v513 = vld [vmem:[%s333 + $0x40] sm:$0xf]
        %v514 = vld [vmem:[%s333 + $0x44] sm:$0xf]
        %v515 = vld [vmem:[%s333 + $0x48] sm:$0xf]
        %v516 = vld [vmem:[%s333 + $0x4c] sm:$0xf]
        %v517 = vld [vmem:[%s333 + $0x50] sm:$0xf]
        %v518 = vld [vmem:[%s333 + $0x54] sm:$0xf]
        %v519 = vld [vmem:[%s333 + $0x58] sm:$0xf]
        %v520 = vld [vmem:[%s333 + $0x5c] sm:$0xf]
        %v521 = vld [vmem:[%s333 + $0x60] sm:$0xf]
        %v522 = vld [vmem:[%s333 + $0x64] sm:$0xf]
        %v523 = vld [vmem:[%s333 + $0x68] sm:$0xf]
        %v524 = vld [vmem:[%s333 + $0x6c] sm:$0xf]
        %v525 = vld [vmem:[%s333 + $0x70] sm:$0xf]
        %v526 = vld [vmem:[%s333 + $0x74] sm:$0xf]
        %v527 = vld [vmem:[%s333 + $0x78] sm:$0xf]
        %v528 = vld [vmem:[%s333 + $0x7c] sm:$0xf]
        %v561 = vunpack.c.l.b16 %v465
        %v562 = vunpack.c.h.b16 %v465
        %v563 = vunpack.c.l.b16 %v466
        %v564 = vunpack.c.h.b16 %v466
        %v565 = vunpack.c.l.b16 %v467
        %v566 = vunpack.c.h.b16 %v467
        %v567 = vunpack.c.l.b16 %v468
        %v568 = vunpack.c.h.b16 %v468
        %v569 = vunpack.c.l.b16 %v469
        %v570 = vunpack.c.h.b16 %v469
        %v571 = vunpack.c.l.b16 %v470
        %v572 = vunpack.c.h.b16 %v470
        %v573 = vunpack.c.l.b16 %v471
        %v574 = vunpack.c.h.b16 %v471
        %v575 = vunpack.c.l.b16 %v472
        %v576 = vunpack.c.h.b16 %v472
        %v577 = vunpack.c.l.b16 %v473
        %v578 = vunpack.c.h.b16 %v473
        %v579 = vunpack.c.l.b16 %v474
        %v580 = vunpack.c.h.b16 %v474
        %v581 = vunpack.c.l.b16 %v475
        %v582 = vunpack.c.h.b16 %v475
        %v583 = vunpack.c.l.b16 %v476
        %v584 = vunpack.c.h.b16 %v476
        %v585 = vunpack.c.l.b16 %v477
        %v586 = vunpack.c.h.b16 %v477
        %v587 = vunpack.c.l.b16 %v478
        %v588 = vunpack.c.h.b16 %v478
        %v589 = vunpack.c.l.b16 %v479
        %v590 = vunpack.c.h.b16 %v479
        %v591 = vunpack.c.l.b16 %v480
        %v592 = vunpack.c.h.b16 %v480
        %v593 = vunpack.c.l.b16 %v481
        %v594 = vunpack.c.h.b16 %v481
        %v595 = vunpack.c.l.b16 %v482
        %v596 = vunpack.c.h.b16 %v482
        %v597 = vunpack.c.l.b16 %v483
        %v598 = vunpack.c.h.b16 %v483
        %v599 = vunpack.c.l.b16 %v484
        %v600 = vunpack.c.h.b16 %v484
        %v601 = vunpack.c.l.b16 %v485
        %v602 = vunpack.c.h.b16 %v485
        %v603 = vunpack.c.l.b16 %v486
        %v604 = vunpack.c.h.b16 %v486
        %v605 = vunpack.c.l.b16 %v487
        %v606 = vunpack.c.h.b16 %v487
        %v607 = vunpack.c.l.b16 %v488
        %v608 = vunpack.c.h.b16 %v488
        %v609 = vunpack.c.l.b16 %v489
        %v610 = vunpack.c.h.b16 %v489
        %v611 = vunpack.c.l.b16 %v490
        %v612 = vunpack.c.h.b16 %v490
        %v613 = vunpack.c.l.b16 %v491
        %v614 = vunpack.c.h.b16 %v491
        %v615 = vunpack.c.l.b16 %v492
        %v616 = vunpack.c.h.b16 %v492
        %v617 = vunpack.c.l.b16 %v493
        %v618 = vunpack.c.h.b16 %v493
        %v619 = vunpack.c.l.b16 %v494
        %v620 = vunpack.c.h.b16 %v494
        %v621 = vunpack.c.l.b16 %v495
        %v622 = vunpack.c.h.b16 %v495
        %v623 = vunpack.c.l.b16 %v496
        %v624 = vunpack.c.h.b16 %v496
        %v625 = vpack.c.b16 %v563, %v561
        %v626 = vpack.c.b16 %v564, %v562
        %v627 = vpack.c.b16 %v567, %v565
        %v628 = vpack.c.b16 %v568, %v566
        %v629 = vpack.c.b16 %v571, %v569
        %v630 = vpack.c.b16 %v572, %v570
        %v631 = vpack.c.b16 %v575, %v573
        %v632 = vpack.c.b16 %v576, %v574
        %v633 = vpack.c.b16 %v579, %v577
        %v634 = vpack.c.b16 %v580, %v578
        %v635 = vpack.c.b16 %v583, %v581
        %v636 = vpack.c.b16 %v584, %v582
        %v637 = vpack.c.b16 %v587, %v585
        %v638 = vpack.c.b16 %v588, %v586
        %v639 = vpack.c.b16 %v591, %v589
        %v640 = vpack.c.b16 %v592, %v590
        %v641 = vpack.c.b16 %v595, %v593
        %v642 = vpack.c.b16 %v596, %v594
        %v643 = vpack.c.b16 %v599, %v597
        %v644 = vpack.c.b16 %v600, %v598
        %v645 = vpack.c.b16 %v603, %v601
        %v646 = vpack.c.b16 %v604, %v602
        %v647 = vpack.c.b16 %v607, %v605
        %v648 = vpack.c.b16 %v608, %v606
        %v649 = vpack.c.b16 %v611, %v609
        %v650 = vpack.c.b16 %v612, %v610
        %v651 = vpack.c.b16 %v615, %v613
        %v652 = vpack.c.b16 %v616, %v614
        %v653 = vpack.c.b16 %v619, %v617
        %v654 = vpack.c.b16 %v620, %v618
        %v655 = vpack.c.b16 %v623, %v621
        %v656 = vpack.c.b16 %v624, %v622
        %v721 = vunpack.c.l.b16 %v497
        %v722 = vunpack.c.l.b16 %v498
        %v723 = vunpack.c.l.b16 %v499
        %v724 = vunpack.c.l.b16 %v500
        %v725 = vunpack.c.l.b16 %v501
        %v726 = vunpack.c.l.b16 %v502
        %v727 = vunpack.c.l.b16 %v503
        %v728 = vunpack.c.l.b16 %v504
        %v729 = vunpack.c.l.b16 %v505
        %v730 = vunpack.c.l.b16 %v506
        %v731 = vunpack.c.l.b16 %v507
        %v732 = vunpack.c.l.b16 %v508
        %v733 = vunpack.c.l.b16 %v509
        %v734 = vunpack.c.l.b16 %v510
        %v735 = vunpack.c.l.b16 %v511
        %v736 = vunpack.c.l.b16 %v512
        %v737 = vunpack.c.l.b16 %v513
        %v738 = vunpack.c.l.b16 %v514
        %v739 = vunpack.c.l.b16 %v515
        %v740 = vunpack.c.l.b16 %v516
        %v741 = vunpack.c.l.b16 %v517
        %v742 = vunpack.c.l.b16 %v518
        %v743 = vunpack.c.l.b16 %v519
        %v744 = vunpack.c.l.b16 %v520
        %v745 = vunpack.c.l.b16 %v521
        %v746 = vunpack.c.l.b16 %v522
        %v747 = vunpack.c.l.b16 %v523
        %v748 = vunpack.c.l.b16 %v524
        %v749 = vunpack.c.l.b16 %v525
        %v750 = vunpack.c.l.b16 %v526
        %v751 = vunpack.c.l.b16 %v527
        %v752 = vunpack.c.l.b16 %v528
        %v753 = vpack.c.b16 %v722, %v721
        %v754 = vpack.c.b16 %v724, %v723
        %v755 = vpack.c.b16 %v726, %v725
        %v756 = vpack.c.b16 %v728, %v727
        %v757 = vpack.c.b16 %v730, %v729
        %v758 = vpack.c.b16 %v732, %v731
        %v759 = vpack.c.b16 %v734, %v733
        %v760 = vpack.c.b16 %v736, %v735
        %v761 = vpack.c.b16 %v738, %v737
        %v762 = vpack.c.b16 %v740, %v739
        %v763 = vpack.c.b16 %v742, %v741
        %v764 = vpack.c.b16 %v744, %v743
        %v765 = vpack.c.b16 %v746, %v745
        %v766 = vpack.c.b16 %v748, %v747
        %v767 = vpack.c.b16 %v750, %v749
        %v768 = vpack.c.b16 %v752, %v751
        %785 = vmatprep.subr.bf16.mxu0 0
        %786 = vmatpush1.bf16.msra.mxu0 %v753
        %787 = vmatprep.subr.bf16.mxu0 0
        %788 = vmatpush1.bf16.msra.mxu0 %v754
        %789 = vmatprep.subr.bf16.mxu0 0
        %790 = vmatpush1.bf16.msra.mxu0 %v755
        %791 = vmatprep.subr.bf16.mxu0 0
        %792 = vmatpush1.bf16.msra.mxu0 %v756
        %793 = vmatprep.subr.bf16.mxu0 0
        %794 = vmatpush1.bf16.msra.mxu0 %v757
        %795 = vmatprep.subr.bf16.mxu0 0
        %796 = vmatpush1.bf16.msra.mxu0 %v758
        %797 = vmatprep.subr.bf16.mxu0 0
        %798 = vmatpush1.bf16.msra.mxu0 %v759
        %799 = vmatprep.subr.bf16.mxu0 0
        %800 = vmatpush1.bf16.msra.mxu0 %v760
        %801 = vmatprep.subr.bf16.mxu0 0
        %802 = vmatpush1.bf16.msra.mxu0 %v761
        %803 = vmatprep.subr.bf16.mxu0 0
        %804 = vmatpush1.bf16.msra.mxu0 %v762
        %805 = vmatprep.subr.bf16.mxu0 0
        %806 = vmatpush1.bf16.msra.mxu0 %v763
        %807 = vmatprep.subr.bf16.mxu0 0
        %808 = vmatpush1.bf16.msra.mxu0 %v764
        %809 = vmatprep.subr.bf16.mxu0 0
        %810 = vmatpush1.bf16.msra.mxu0 %v765
        %811 = vmatprep.subr.bf16.mxu0 0
        %812 = vmatpush1.bf16.msra.mxu0 %v766
        %813 = vmatprep.subr.bf16.mxu0 0
        %814 = vmatpush1.bf16.msra.mxu0 %v767
        %815 = vmatprep.subr.bf16.mxu0 0
        %816 = vmatpush1.bf16.msra.mxu0 %v768
        %817 = vmatprep.mubr.bf16.mxu0 %v626
        %818 = vmatmul.mubr.bf16.gmra.mrb[0].mxu0 %v625
        %v819 = vpop.f32.mrb[0].mxu0
        %v820 = vadd.f32 0.0, %v819
        %v821 = vpop.f32.mrb[0].mxu0
        %v822 = vpop.f32.mrb[0].mxu0
        %v823 = vadd.f32 0.0, %v822
        %v824 = vpop.f32.mrb[0].mxu0
        %825 = vmatprep.mubr.bf16.mxu0 %v628
        %826 = vmatmul.mubr.bf16.gmra.mrb[0].mxu0 %v627
        %v827 = vpop.f32.mrb[0].mxu0
        %v828 = vadd.f32 0.0, %v827
        %v829 = vpop.f32.mrb[0].mxu0
        %v830 = vpop.f32.mrb[0].mxu0
        %v831 = vadd.f32 0.0, %v830
        %v832 = vpop.f32.mrb[0].mxu0
        %833 = vmatprep.mubr.bf16.mxu0 %v630
        %834 = vmatmul.mubr.bf16.gmra.mrb[0].mxu0 %v629
        %v835 = vpop.f32.mrb[0].mxu0
        %v836 = vadd.f32 0.0, %v835
        %v837 = vpop.f32.mrb[0].mxu0
        %v838 = vpop.f32.mrb[0].mxu0
        %v839 = vadd.f32 0.0, %v838
        %v840 = vpop.f32.mrb[0].mxu0
        %841 = vmatprep.mubr.bf16.mxu0 %v632
        %842 = vmatmul.mubr.bf16.gmra.mrb[0].mxu0 %v631
        %v843 = vpop.f32.mrb[0].mxu0
        %v844 = vadd.f32 0.0, %v843
        %v845 = vpop.f32.mrb[0].mxu0
        %v846 = vpop.f32.mrb[0].mxu0
        %v847 = vadd.f32 0.0, %v846
        %v848 = vpop.f32.mrb[0].mxu0
        %849 = vmatprep.mubr.bf16.mxu0 %v634
        %850 = vmatmul.mubr.bf16.gmra.mrb[0].mxu0 %v633
        %v851 = vpop.f32.mrb[0].mxu0
        %v852 = vadd.f32 0.0, %v851
        %v853 = vpop.f32.mrb[0].mxu0
        %v854 = vpop.f32.mrb[0].mxu0
        %v855 = vadd.f32 0.0, %v854
        %v856 = vpop.f32.mrb[0].mxu0
        %857 = vmatprep.mubr.bf16.mxu0 %v636
        %858 = vmatmul.mubr.bf16.gmra.mrb[0].mxu0 %v635
        %v859 = vpop.f32.mrb[0].mxu0
        %v860 = vadd.f32 0.0, %v859
        %v861 = vpop.f32.mrb[0].mxu0
        %v862 = vpop.f32.mrb[0].mxu0
        %v863 = vadd.f32 0.0, %v862
        %v864 = vpop.f32.mrb[0].mxu0
        %865 = vmatprep.mubr.bf16.mxu0 %v638
        %866 = vmatmul.mubr.bf16.gmra.mrb[0].mxu0 %v637
        %v867 = vpop.f32.mrb[0].mxu0
        %v868 = vadd.f32 0.0, %v867
        %v869 = vpop.f32.mrb[0].mxu0
        %v870 = vpop.f32.mrb[0].mxu0
        %v871 = vadd.f32 0.0, %v870
        %v872 = vpop.f32.mrb[0].mxu0
        %873 = vmatprep.mubr.bf16.mxu0 %v640
        %874 = vmatmul.mubr.bf16.gmra.mrb[0].mxu0 %v639
        %v875 = vpop.f32.mrb[0].mxu0
        %v876 = vadd.f32 0.0, %v875
        %v877 = vpop.f32.mrb[0].mxu0
        %v878 = vpop.f32.mrb[0].mxu0
        %v879 = vadd.f32 0.0, %v878
        %v880 = vpop.f32.mrb[0].mxu0
        %881 = vmatprep.mubr.bf16.mxu0 %v642
        %882 = vmatmul.mubr.bf16.gmra.mrb[0].mxu0 %v641
        %v883 = vpop.f32.mrb[0].mxu0
        %v884 = vadd.f32 0.0, %v883
        %v885 = vpop.f32.mrb[0].mxu0
        %v886 = vpop.f32.mrb[0].mxu0
        %v887 = vadd.f32 0.0, %v886
        %v888 = vpop.f32.mrb[0].mxu0
        %889 = vmatprep.mubr.bf16.mxu0 %v644
        %890 = vmatmul.mubr.bf16.gmra.mrb[0].mxu0 %v643
        %v891 = vpop.f32.mrb[0].mxu0
        %v892 = vadd.f32 0.0, %v891
        %v893 = vpop.f32.mrb[0].mxu0
        %v894 = vpop.f32.mrb[0].mxu0
        %v895 = vadd.f32 0.0, %v894
        %v896 = vpop.f32.mrb[0].mxu0
        %897 = vmatprep.mubr.bf16.mxu0 %v646
        %898 = vmatmul.mubr.bf16.gmra.mrb[0].mxu0 %v645
        %v899 = vpop.f32.mrb[0].mxu0
        %v900 = vadd.f32 0.0, %v899
        %v901 = vpop.f32.mrb[0].mxu0
        %v902 = vpop.f32.mrb[0].mxu0
        %v903 = vadd.f32 0.0, %v902
        %v904 = vpop.f32.mrb[0].mxu0
        %905 = vmatprep.mubr.bf16.mxu0 %v648
        %906 = vmatmul.mubr.bf16.gmra.mrb[0].mxu0 %v647
        %v907 = vpop.f32.mrb[0].mxu0
        %v908 = vadd.f32 0.0, %v907
        %v909 = vpop.f32.mrb[0].mxu0
        %v910 = vpop.f32.mrb[0].mxu0
        %v911 = vadd.f32 0.0, %v910
        %v912 = vpop.f32.mrb[0].mxu0
        %913 = vmatprep.mubr.bf16.mxu0 %v650
        %914 = vmatmul.mubr.bf16.gmra.mrb[0].mxu0 %v649
        %v915 = vpop.f32.mrb[0].mxu0
        %v916 = vadd.f32 0.0, %v915
        %v917 = vpop.f32.mrb[0].mxu0
        %v918 = vpop.f32.mrb[0].mxu0
        %v919 = vadd.f32 0.0, %v918
        %v920 = vpop.f32.mrb[0].mxu0
        %921 = vmatprep.mubr.bf16.mxu0 %v652
        %922 = vmatmul.mubr.bf16.gmra.mrb[0].mxu0 %v651
        %v923 = vpop.f32.mrb[0].mxu0
        %v924 = vadd.f32 0.0, %v923
        %v925 = vpop.f32.mrb[0].mxu0
        %v926 = vpop.f32.mrb[0].mxu0
        %v927 = vadd.f32 0.0, %v926
        %v928 = vpop.f32.mrb[0].mxu0
        %929 = vmatprep.mubr.bf16.mxu0 %v654
        %930 = vmatmul.mubr.bf16.gmra.mrb[0].mxu0 %v653
        %v931 = vpop.f32.mrb[0].mxu0
        %v932 = vadd.f32 0.0, %v931
        %v933 = vpop.f32.mrb[0].mxu0
        %v934 = vpop.f32.mrb[0].mxu0
        %v935 = vadd.f32 0.0, %v934
        %v936 = vpop.f32.mrb[0].mxu0
        %937 = vmatprep.mubr.bf16.mxu0 %v656
        %938 = vmatmul.mubr.bf16.gmra.mrb[0].mxu0 %v655
        %v939 = vpop.f32.mrb[0].mxu0
        %v940 = vadd.f32 0.0, %v939
        %v941 = vpop.f32.mrb[0].mxu0
        %v942 = vpop.f32.mrb[0].mxu0
        %v943 = vadd.f32 0.0, %v942
        %v944 = vpop.f32.mrb[0].mxu0
        %945 = vdwg.mxu0
        %v946 = vadd.f32 %v433, %v820
        %v947 = vadd.f32 %v434, %v823
        %v948 = vadd.f32 %v435, %v828
        %v949 = vadd.f32 %v436, %v831
        %v950 = vadd.f32 %v437, %v836
        %v951 = vadd.f32 %v438, %v839
        %v952 = vadd.f32 %v439, %v844
        %v953 = vadd.f32 %v440, %v847
        %v954 = vadd.f32 %v441, %v852
        %v955 = vadd.f32 %v442, %v855
        %v956 = vadd.f32 %v443, %v860
        %v957 = vadd.f32 %v444, %v863
        %v958 = vadd.f32 %v445, %v868
        %v959 = vadd.f32 %v446, %v871
        %v960 = vadd.f32 %v447, %v876
        %v961 = vadd.f32 %v448, %v879
        %v962 = vadd.f32 %v449, %v884
        %v963 = vadd.f32 %v450, %v887
        %v964 = vadd.f32 %v451, %v892
        %v965 = vadd.f32 %v452, %v895
        %v966 = vadd.f32 %v453, %v900
        %v967 = vadd.f32 %v454, %v903
        %v968 = vadd.f32 %v455, %v908
        %v969 = vadd.f32 %v456, %v911
        %v970 = vadd.f32 %v457, %v916
        %v971 = vadd.f32 %v458, %v919
        %v972 = vadd.f32 %v459, %v924
        %v973 = vadd.f32 %v460, %v927
        %v974 = vadd.f32 %v461, %v932
        %v975 = vadd.f32 %v462, %v935
        %v976 = vadd.f32 %v463, %v940
        %v977 = vadd.f32 %v464, %v943
        %978 = vst [vmem:[#allocation2] sm:$0xff] %v946
        %979 = vst [vmem:[#allocation2 + $0x8] sm:$0xff] %v947
        %980 = vst [vmem:[#allocation2 + $0x10] sm:$0xff] %v948
        %981 = vst [vmem:[#allocation2 + $0x18] sm:$0xff] %v949
        %982 = vst [vmem:[#allocation2 + $0x20] sm:$0xff] %v950
        %983 = vst [vmem:[#allocation2 + $0x28] sm:$0xff] %v951
        %984 = vst [vmem:[#allocation2 + $0x30] sm:$0xff] %v952
        %985 = vst [vmem:[#allocation2 + $0x38] sm:$0xff] %v953
        %986 = vst [vmem:[#allocation2 + $0x40] sm:$0xff] %v954
        %987 = vst [vmem:[#allocation2 + $0x48] sm:$0xff] %v955
        %988 = vst [vmem:[#allocation2 + $0x50] sm:$0xff] %v956
        %989 = vst [vmem:[#allocation2 + $0x58] sm:$0xff] %v957
        %990 = vst [vmem:[#allocation2 + $0x60] sm:$0xff] %v958
        %991 = vst [vmem:[#allocation2 + $0x68] sm:$0xff] %v959
        %992 = vst [vmem:[#allocation2 + $0x70] sm:$0xff] %v960
        %993 = vst [vmem:[#allocation2 + $0x78] sm:$0xff] %v961
        %994 = vst [vmem:[#allocation2 + $0x80] sm:$0xff] %v962
        %995 = vst [vmem:[#allocation2 + $0x88] sm:$0xff] %v963
        %996 = vst [vmem:[#allocation2 + $0x90] sm:$0xff] %v964
        %997 = vst [vmem:[#allocation2 + $0x98] sm:$0xff] %v965
        %998 = vst [vmem:[#allocation2 + $0xa0] sm:$0xff] %v966
        %999 = vst [vmem:[#allocation2 + $0xa8] sm:$0xff] %v967
        %1000 = vst [vmem:[#allocation2 + $0xb0] sm:$0xff] %v968
        %1001 = vst [vmem:[#allocation2 + $0xb8] sm:$0xff] %v969
        %1002 = vst [vmem:[#allocation2 + $0xc0] sm:$0xff] %v970
        %1003 = vst [vmem:[#allocation2 + $0xc8] sm:$0xff] %v971
        %1004 = vst [vmem:[#allocation2 + $0xd0] sm:$0xff] %v972
        %1005 = vst [vmem:[#allocation2 + $0xd8] sm:$0xff] %v973
        %1006 = vst [vmem:[#allocation2 + $0xe0] sm:$0xff] %v974
        %1007 = vst [vmem:[#allocation2 + $0xe8] sm:$0xff] %v975
        %1008 = vst [vmem:[#allocation2 + $0xf0] sm:$0xff] %v976
        %1009 = vst [vmem:[#allocation2 + $0xf8] sm:$0xff] %v977
        %p1010 = scmp.eq.s32.totalorder %s36, 3
        // Predicated region
        $region61: #{tpu_custom_call.1} parent=39 // pred_check
          %p1011 = pneg %p1010
        $region62: #{tpu_custom_call.1} parent=39 // pred_check_branch
          %1013 = sbr.rel (%p1011) target = $region64
        $region63: #{tpu_custom_call.1} parent=39 // pred_region
          %v1014 = vld [vmem:[%s342] sm:$0xf]
          %v1015 = vld [vmem:[%s342 + $0x4] sm:$0xf]
          %v1016 = vld [vmem:[%s342 + $0x8] sm:$0xf]
          %v1017 = vld [vmem:[%s342 + $0xc] sm:$0xf]
          %v1018 = vld [vmem:[%s342 + $0x10] sm:$0xf]
          %v1019 = vld [vmem:[%s342 + $0x14] sm:$0xf]
          %v1020 = vld [vmem:[%s342 + $0x18] sm:$0xf]
          %v1021 = vld [vmem:[%s342 + $0x1c] sm:$0xf]
          %v1022 = vld [vmem:[%s342 + $0x20] sm:$0xf]
          %v1023 = vld [vmem:[%s342 + $0x24] sm:$0xf]
          %v1024 = vld [vmem:[%s342 + $0x28] sm:$0xf]
          %v1025 = vld [vmem:[%s342 + $0x2c] sm:$0xf]
          %v1026 = vld [vmem:[%s342 + $0x30] sm:$0xf]
          %v1027 = vld [vmem:[%s342 + $0x34] sm:$0xf]
          %v1028 = vld [vmem:[%s342 + $0x38] sm:$0xf]
          %v1029 = vld [vmem:[%s342 + $0x3c] sm:$0xf]
          %v1030 = vld [vmem:[%s342 + $0x40] sm:$0xf]
          %v1031 = vld [vmem:[%s342 + $0x44] sm:$0xf]
          %v1032 = vld [vmem:[%s342 + $0x48] sm:$0xf]
          %v1033 = vld [vmem:[%s342 + $0x4c] sm:$0xf]
          %v1034 = vld [vmem:[%s342 + $0x50] sm:$0xf]
          %v1035 = vld [vmem:[%s342 + $0x54] sm:$0xf]
          %v1036 = vld [vmem:[%s342 + $0x58] sm:$0xf]
          %v1037 = vld [vmem:[%s342 + $0x5c] sm:$0xf]
          %v1038 = vld [vmem:[%s342 + $0x60] sm:$0xf]
          %v1039 = vld [vmem:[%s342 + $0x64] sm:$0xf]
          %v1040 = vld [vmem:[%s342 + $0x68] sm:$0xf]
          %v1041 = vld [vmem:[%s342 + $0x6c] sm:$0xf]
          %v1042 = vld [vmem:[%s342 + $0x70] sm:$0xf]
          %v1043 = vld [vmem:[%s342 + $0x74] sm:$0xf]
          %v1044 = vld [vmem:[%s342 + $0x78] sm:$0xf]
          %v1045 = vld [vmem:[%s342 + $0x7c] sm:$0xf]
          %v1046 = vld [vmem:[#allocation2] sm:$0xff]
          %v1047 = vld [vmem:[#allocation2 + $0x8] sm:$0xff]
          %v1048 = vld [vmem:[#allocation2 + $0x10] sm:$0xff]
          %v1049 = vld [vmem:[#allocation2 + $0x18] sm:$0xff]
          %v1050 = vld [vmem:[#allocation2 + $0x20] sm:$0xff]
          %v1051 = vld [vmem:[#allocation2 + $0x28] sm:$0xff]
          %v1052 = vld [vmem:[#allocation2 + $0x30] sm:$0xff]
          %v1053 = vld [vmem:[#allocation2 + $0x38] sm:$0xff]
          %v1054 = vld [vmem:[#allocation2 + $0x40] sm:$0xff]
          %v1055 = vld [vmem:[#allocation2 + $0x48] sm:$0xff]
          %v1056 = vld [vmem:[#allocation2 + $0x50] sm:$0xff]
          %v1057 = vld [vmem:[#allocation2 + $0x58] sm:$0xff]
          %v1058 = vld [vmem:[#allocation2 + $0x60] sm:$0xff]
          %v1059 = vld [vmem:[#allocation2 + $0x68] sm:$0xff]
          %v1060 = vld [vmem:[#allocation2 + $0x70] sm:$0xff]
          %v1061 = vld [vmem:[#allocation2 + $0x78] sm:$0xff]
          %v1062 = vld [vmem:[#allocation2 + $0x80] sm:$0xff]
          %v1063 = vld [vmem:[#allocation2 + $0x88] sm:$0xff]
          %v1064 = vld [vmem:[#allocation2 + $0x90] sm:$0xff]
          %v1065 = vld [vmem:[#allocation2 + $0x98] sm:$0xff]
          %v1066 = vld [vmem:[#allocation2 + $0xa0] sm:$0xff]
          %v1067 = vld [vmem:[#allocation2 + $0xa8] sm:$0xff]
          %v1068 = vld [vmem:[#allocation2 + $0xb0] sm:$0xff]
          %v1069 = vld [vmem:[#allocation2 + $0xb8] sm:$0xff]
          %v1070 = vld [vmem:[#allocation2 + $0xc0] sm:$0xff]
          %v1071 = vld [vmem:[#allocation2 + $0xc8] sm:$0xff]
          %v1072 = vld [vmem:[#allocation2 + $0xd0] sm:$0xff]
          %v1073 = vld [vmem:[#allocation2 + $0xd8] sm:$0xff]
          %v1074 = vld [vmem:[#allocation2 + $0xe0] sm:$0xff]
          %v1075 = vld [vmem:[#allocation2 + $0xe8] sm:$0xff]
          %v1076 = vld [vmem:[#allocation2 + $0xf0] sm:$0xff]
          %v1077 = vld [vmem:[#allocation2 + $0xf8] sm:$0xff]
          %v1078 = vpack.c.bf16 %v1047, %v1046
          %v1079 = vpack.c.bf16 %v1049, %v1048
          %v1080 = vpack.c.bf16 %v1051, %v1050
          %v1081 = vpack.c.bf16 %v1053, %v1052
          %v1082 = vpack.c.bf16 %v1055, %v1054
          %v1083 = vpack.c.bf16 %v1057, %v1056
          %v1084 = vpack.c.bf16 %v1059, %v1058
          %v1085 = vpack.c.bf16 %v1061, %v1060
          %v1086 = vpack.c.bf16 %v1063, %v1062
          %v1087 = vpack.c.bf16 %v1065, %v1064
          %v1088 = vpack.c.bf16 %v1067, %v1066
          %v1089 = vpack.c.bf16 %v1069, %v1068
          %v1090 = vpack.c.bf16 %v1071, %v1070
          %v1091 = vpack.c.bf16 %v1073, %v1072
          %v1092 = vpack.c.bf16 %v1075, %v1074
          %v1093 = vpack.c.bf16 %v1077, %v1076
          %v1126 = vunpack.c.l.b16 %v1014
          %v1127 = vunpack.c.l.b16 %v1015
          %v1128 = vunpack.c.l.b16 %v1016
          %v1129 = vunpack.c.l.b16 %v1017
          %v1130 = vunpack.c.l.b16 %v1018
          %v1131 = vunpack.c.l.b16 %v1019
          %v1132 = vunpack.c.l.b16 %v1020
          %v1133 = vunpack.c.l.b16 %v1021
          %v1134 = vunpack.c.l.b16 %v1022
          %v1135 = vunpack.c.l.b16 %v1023
          %v1136 = vunpack.c.l.b16 %v1024
          %v1137 = vunpack.c.l.b16 %v1025
          %v1138 = vunpack.c.l.b16 %v1026
          %v1139 = vunpack.c.l.b16 %v1027
          %v1140 = vunpack.c.l.b16 %v1028
          %v1141 = vunpack.c.l.b16 %v1029
          %v1142 = vunpack.c.l.b16 %v1030
          %v1143 = vunpack.c.l.b16 %v1031
          %v1144 = vunpack.c.l.b16 %v1032
          %v1145 = vunpack.c.l.b16 %v1033
          %v1146 = vunpack.c.l.b16 %v1034
          %v1147 = vunpack.c.l.b16 %v1035
          %v1148 = vunpack.c.l.b16 %v1036
          %v1149 = vunpack.c.l.b16 %v1037
          %v1150 = vunpack.c.l.b16 %v1038
          %v1151 = vunpack.c.l.b16 %v1039
          %v1152 = vunpack.c.l.b16 %v1040
          %v1153 = vunpack.c.l.b16 %v1041
          %v1154 = vunpack.c.l.b16 %v1042
          %v1155 = vunpack.c.l.b16 %v1043
          %v1156 = vunpack.c.l.b16 %v1044
          %v1157 = vunpack.c.l.b16 %v1045
          %v1158 = vpack.c.b16 %v1127, %v1126
          %v1159 = vpack.c.b16 %v1129, %v1128
          %v1160 = vpack.c.b16 %v1131, %v1130
          %v1161 = vpack.c.b16 %v1133, %v1132
          %v1162 = vpack.c.b16 %v1135, %v1134
          %v1163 = vpack.c.b16 %v1137, %v1136
          %v1164 = vpack.c.b16 %v1139, %v1138
          %v1165 = vpack.c.b16 %v1141, %v1140
          %v1166 = vpack.c.b16 %v1143, %v1142
          %v1167 = vpack.c.b16 %v1145, %v1144
          %v1168 = vpack.c.b16 %v1147, %v1146
          %v1169 = vpack.c.b16 %v1149, %v1148
          %v1170 = vpack.c.b16 %v1151, %v1150
          %v1171 = vpack.c.b16 %v1153, %v1152
          %v1172 = vpack.c.b16 %v1155, %v1154
          %v1173 = vpack.c.b16 %v1157, %v1156
          %v1190 = vld [vmem:[#allocation9] sm:$0xff]
          %v1191 = vld [vmem:[#allocation9 + $0x8] sm:$0xff]
          %v1192 = vld [vmem:[#allocation9 + $0x10] sm:$0xff]
          %v1193 = vld [vmem:[#allocation9 + $0x18] sm:$0xff]
          %v1194 = vld [vmem:[#allocation9 + $0x20] sm:$0xff]
          %v1195 = vld [vmem:[#allocation9 + $0x28] sm:$0xff]
          %v1196 = vld [vmem:[#allocation9 + $0x30] sm:$0xff]
          %v1197 = vld [vmem:[#allocation9 + $0x38] sm:$0xff]
          %v1198 = vld [vmem:[#allocation9 + $0x40] sm:$0xff]
          %v1199 = vld [vmem:[#allocation9 + $0x48] sm:$0xff]
          %v1200 = vld [vmem:[#allocation9 + $0x50] sm:$0xff]
          %v1201 = vld [vmem:[#allocation9 + $0x58] sm:$0xff]
          %v1202 = vld [vmem:[#allocation9 + $0x60] sm:$0xff]
          %v1203 = vld [vmem:[#allocation9 + $0x68] sm:$0xff]
          %v1204 = vld [vmem:[#allocation9 + $0x70] sm:$0xff]
          %v1205 = vld [vmem:[#allocation9 + $0x78] sm:$0xff]
          %v1206 = vld [vmem:[#allocation9 + $0x80] sm:$0xff]
          %v1207 = vld [vmem:[#allocation9 + $0x88] sm:$0xff]
          %v1208 = vld [vmem:[#allocation9 + $0x90] sm:$0xff]
          %v1209 = vld [vmem:[#allocation9 + $0x98] sm:$0xff]
          %v1210 = vld [vmem:[#allocation9 + $0xa0] sm:$0xff]
          %v1211 = vld [vmem:[#allocation9 + $0xa8] sm:$0xff]
          %v1212 = vld [vmem:[#allocation9 + $0xb0] sm:$0xff]
          %v1213 = vld [vmem:[#allocation9 + $0xb8] sm:$0xff]
          %v1214 = vld [vmem:[#allocation9 + $0xc0] sm:$0xff]
          %v1215 = vld [vmem:[#allocation9 + $0xc8] sm:$0xff]
          %v1216 = vld [vmem:[#allocation9 + $0xd0] sm:$0xff]
          %v1217 = vld [vmem:[#allocation9 + $0xd8] sm:$0xff]
          %v1218 = vld [vmem:[#allocation9 + $0xe0] sm:$0xff]
          %v1219 = vld [vmem:[#allocation9 + $0xe8] sm:$0xff]
          %v1220 = vld [vmem:[#allocation9 + $0xf0] sm:$0xff]
          %v1221 = vld [vmem:[#allocation9 + $0xf8] sm:$0xff]
          %v1222 = vld [vmem:[%s4] sm:$0x3]
          %v1224 = vlaneseq
          %v1225 = vshrl.u32 %v1224, 7
          %v1226 = vsub.s32 0, %v1225
          %v1227 = vrot.slane %v1222, %v1226
          %v1228 = vlaneseq
          %v1229 = vshrl.u32 %v1228, 7
          %v1230 = vsub.s32 1, %v1229
          %v1231 = vrot.slane %v1222, %v1230
          %v1266 = vunpack.c.l.b16 %v1190
          %v1267 = vunpack.c.h.b16 %v1190
          %v1268 = vunpack.c.l.b16 %v1191
          %v1269 = vunpack.c.h.b16 %v1191
          %v1270 = vunpack.c.l.b16 %v1192
          %v1271 = vunpack.c.h.b16 %v1192
          %v1272 = vunpack.c.l.b16 %v1193
          %v1273 = vunpack.c.h.b16 %v1193
          %v1274 = vunpack.c.l.b16 %v1194
          %v1275 = vunpack.c.h.b16 %v1194
          %v1276 = vunpack.c.l.b16 %v1195
          %v1277 = vunpack.c.h.b16 %v1195
          %v1278 = vunpack.c.l.b16 %v1196
          %v1279 = vunpack.c.h.b16 %v1196
          %v1280 = vunpack.c.l.b16 %v1197
          %v1281 = vunpack.c.h.b16 %v1197
          %v1282 = vunpack.c.l.b16 %v1198
          %v1283 = vunpack.c.h.b16 %v1198
          %v1284 = vunpack.c.l.b16 %v1199
          %v1285 = vunpack.c.h.b16 %v1199
          %v1286 = vunpack.c.l.b16 %v1200
          %v1287 = vunpack.c.h.b16 %v1200
          %v1288 = vunpack.c.l.b16 %v1201
          %v1289 = vunpack.c.h.b16 %v1201
          %v1290 = vunpack.c.l.b16 %v1202
          %v1291 = vunpack.c.h.b16 %v1202
          %v1292 = vunpack.c.l.b16 %v1203
          %v1293 = vunpack.c.h.b16 %v1203
          %v1294 = vunpack.c.l.b16 %v1204
          %v1295 = vunpack.c.h.b16 %v1204
          %v1296 = vunpack.c.l.b16 %v1205
          %v1297 = vunpack.c.h.b16 %v1205
          %v1298 = vunpack.c.l.b16 %v1206
          %v1299 = vunpack.c.h.b16 %v1206
          %v1300 = vunpack.c.l.b16 %v1207
          %v1301 = vunpack.c.h.b16 %v1207
          %v1302 = vunpack.c.l.b16 %v1208
          %v1303 = vunpack.c.h.b16 %v1208
          %v1304 = vunpack.c.l.b16 %v1209
          %v1305 = vunpack.c.h.b16 %v1209
          %v1306 = vunpack.c.l.b16 %v1210
          %v1307 = vunpack.c.h.b16 %v1210
          %v1308 = vunpack.c.l.b16 %v1211
          %v1309 = vunpack.c.h.b16 %v1211
          %v1310 = vunpack.c.l.b16 %v1212
          %v1311 = vunpack.c.h.b16 %v1212
          %v1312 = vunpack.c.l.b16 %v1213
          %v1313 = vunpack.c.h.b16 %v1213
          %v1314 = vunpack.c.l.b16 %v1214
          %v1315 = vunpack.c.h.b16 %v1214
          %v1316 = vunpack.c.l.b16 %v1215
          %v1317 = vunpack.c.h.b16 %v1215
          %v1318 = vunpack.c.l.b16 %v1216
          %v1319 = vunpack.c.h.b16 %v1216
          %v1320 = vunpack.c.l.b16 %v1217
          %v1321 = vunpack.c.h.b16 %v1217
          %v1322 = vunpack.c.l.b16 %v1218
          %v1323 = vunpack.c.h.b16 %v1218
          %v1324 = vunpack.c.l.b16 %v1219
          %v1325 = vunpack.c.h.b16 %v1219
          %v1326 = vunpack.c.l.b16 %v1220
          %v1327 = vunpack.c.h.b16 %v1220
          %v1328 = vunpack.c.l.b16 %v1221
          %v1329 = vunpack.c.h.b16 %v1221
          %v1330 = vpack.c.b16 %v1268, %v1266
          %v1331 = vpack.c.b16 %v1269, %v1267
          %v1332 = vpack.c.b16 %v1272, %v1270
          %v1333 = vpack.c.b16 %v1273, %v1271
          %v1334 = vpack.c.b16 %v1276, %v1274
          %v1335 = vpack.c.b16 %v1277, %v1275
          %v1336 = vpack.c.b16 %v1280, %v1278
          %v1337 = vpack.c.b16 %v1281, %v1279
          %v1338 = vpack.c.b16 %v1284, %v1282
          %v1339 = vpack.c.b16 %v1285, %v1283
          %v1340 = vpack.c.b16 %v1288, %v1286
          %v1341 = vpack.c.b16 %v1289, %v1287
          %v1342 = vpack.c.b16 %v1292, %v1290
          %v1343 = vpack.c.b16 %v1293, %v1291
          %v1344 = vpack.c.b16 %v1296, %v1294
          %v1345 = vpack.c.b16 %v1297, %v1295
          %v1346 = vpack.c.b16 %v1300, %v1298
          %v1347 = vpack.c.b16 %v1301, %v1299
          %v1348 = vpack.c.b16 %v1304, %v1302
          %v1349 = vpack.c.b16 %v1305, %v1303
          %v1350 = vpack.c.b16 %v1308, %v1306
          %v1351 = vpack.c.b16 %v1309, %v1307
          %v1352 = vpack.c.b16 %v1312, %v1310
          %v1353 = vpack.c.b16 %v1313, %v1311
          %v1354 = vpack.c.b16 %v1316, %v1314
          %v1355 = vpack.c.b16 %v1317, %v1315
          %v1356 = vpack.c.b16 %v1320, %v1318
          %v1357 = vpack.c.b16 %v1321, %v1319
          %v1358 = vpack.c.b16 %v1324, %v1322
          %v1359 = vpack.c.b16 %v1325, %v1323
          %v1360 = vpack.c.b16 %v1328, %v1326
          %v1361 = vpack.c.b16 %v1329, %v1327
          %1394 = vmatprep.subr.bf16.mxu0 %v1331
          %1395 = vmatpush1.bf16.msra.mxu0 %v1330
          %1396 = vmatprep.subr.bf16.mxu0 %v1333
          %1397 = vmatpush1.bf16.msra.mxu0 %v1332
          %1398 = vmatprep.subr.bf16.mxu0 %v1335
          %1399 = vmatpush1.bf16.msra.mxu0 %v1334
          %1400 = vmatprep.subr.bf16.mxu0 %v1337
          %1401 = vmatpush1.bf16.msra.mxu0 %v1336
          %1402 = vmatprep.subr.bf16.mxu0 %v1339
          %1403 = vmatpush1.bf16.msra.mxu0 %v1338
          %1404 = vmatprep.subr.bf16.mxu0 %v1341
          %1405 = vmatpush1.bf16.msra.mxu0 %v1340
          %1406 = vmatprep.subr.bf16.mxu0 %v1343
          %1407 = vmatpush1.bf16.msra.mxu0 %v1342
          %1408 = vmatprep.subr.bf16.mxu0 %v1345
          %1409 = vmatpush1.bf16.msra.mxu0 %v1344
          %1410 = vmatprep.subr.bf16.mxu0 %v1347
          %1411 = vmatpush1.bf16.msra.mxu0 %v1346
          %1412 = vmatprep.subr.bf16.mxu0 %v1349
          %1413 = vmatpush1.bf16.msra.mxu0 %v1348
          %1414 = vmatprep.subr.bf16.mxu0 %v1351
          %1415 = vmatpush1.bf16.msra.mxu0 %v1350
          %1416 = vmatprep.subr.bf16.mxu0 %v1353
          %1417 = vmatpush1.bf16.msra.mxu0 %v1352
          %1418 = vmatprep.subr.bf16.mxu0 %v1355
          %1419 = vmatpush1.bf16.msra.mxu0 %v1354
          %1420 = vmatprep.subr.bf16.mxu0 %v1357
          %1421 = vmatpush1.bf16.msra.mxu0 %v1356
          %1422 = vmatprep.subr.bf16.mxu0 %v1359
          %1423 = vmatpush1.bf16.msra.mxu0 %v1358
          %1424 = vmatprep.subr.bf16.mxu0 %v1361
          %1425 = vmatpush1.bf16.msra.mxu0 %v1360
          %1426 = vmatprep.mubr.bf16.mxu0 %v1078
          %1427 = vmatmul.mubr.bf16.gmra.mrb[0].mxu0 %v1158
          %v1428 = vpop.f32.mrb[0].mxu0
          %v1429 = vadd.f32 %v1227, %v1428
          %v1430 = vpop.f32.mrb[0].mxu0
          %v1431 = vadd.f32 %v1231, %v1430
          %v1432 = vpop.f32.mrb[0].mxu0
          %v1433 = vadd.f32 %v1227, %v1432
          %v1434 = vpop.f32.mrb[0].mxu0
          %v1435 = vadd.f32 %v1231, %v1434
          %1436 = vmatprep.mubr.bf16.mxu0 %v1079
          %1437 = vmatmul.mubr.bf16.gmra.mrb[0].mxu0 %v1159
          %v1438 = vpop.f32.mrb[0].mxu0
          %v1439 = vadd.f32 %v1227, %v1438
          %v1440 = vpop.f32.mrb[0].mxu0
          %v1441 = vadd.f32 %v1231, %v1440
          %v1442 = vpop.f32.mrb[0].mxu0
          %v1443 = vadd.f32 %v1227, %v1442
          %v1444 = vpop.f32.mrb[0].mxu0
          %v1445 = vadd.f32 %v1231, %v1444
          %1446 = vmatprep.mubr.bf16.mxu0 %v1080
          %1447 = vmatmul.mubr.bf16.gmra.mrb[0].mxu0 %v1160
          %v1448 = vpop.f32.mrb[0].mxu0
          %v1449 = vadd.f32 %v1227, %v1448
          %v1450 = vpop.f32.mrb[0].mxu0
          %v1451 = vadd.f32 %v1231, %v1450
          %v1452 = vpop.f32.mrb[0].mxu0
          %v1453 = vadd.f32 %v1227, %v1452
          %v1454 = vpop.f32.mrb[0].mxu0
          %v1455 = vadd.f32 %v1231, %v1454
          %1456 = vmatprep.mubr.bf16.mxu0 %v1081
          %1457 = vmatmul.mubr.bf16.gmra.mrb[0].mxu0 %v1161
          %v1458 = vpop.f32.mrb[0].mxu0
          %v1459 = vadd.f32 %v1227, %v1458
          %v1460 = vpop.f32.mrb[0].mxu0
          %v1461 = vadd.f32 %v1231, %v1460
          %v1462 = vpop.f32.mrb[0].mxu0
          %v1463 = vadd.f32 %v1227, %v1462
          %v1464 = vpop.f32.mrb[0].mxu0
          %v1465 = vadd.f32 %v1231, %v1464
          %1466 = vmatprep.mubr.bf16.mxu0 %v1082
          %1467 = vmatmul.mubr.bf16.gmra.mrb[0].mxu0 %v1162
          %v1468 = vpop.f32.mrb[0].mxu0
          %v1469 = vadd.f32 %v1227, %v1468
          %v1470 = vpop.f32.mrb[0].mxu0
          %v1471 = vadd.f32 %v1231, %v1470
          %v1472 = vpop.f32.mrb[0].mxu0
          %v1473 = vadd.f32 %v1227, %v1472
          %v1474 = vpop.f32.mrb[0].mxu0
          %v1475 = vadd.f32 %v1231, %v1474
          %1476 = vmatprep.mubr.bf16.mxu0 %v1083
          %1477 = vmatmul.mubr.bf16.gmra.mrb[0].mxu0 %v1163
          %v1478 = vpop.f32.mrb[0].mxu0
          %v1479 = vadd.f32 %v1227, %v1478
          %v1480 = vpop.f32.mrb[0].mxu0
          %v1481 = vadd.f32 %v1231, %v1480
          %v1482 = vpop.f32.mrb[0].mxu0
          %v1483 = vadd.f32 %v1227, %v1482
          %v1484 = vpop.f32.mrb[0].mxu0
          %v1485 = vadd.f32 %v1231, %v1484
          %1486 = vmatprep.mubr.bf16.mxu0 %v1084
          %1487 = vmatmul.mubr.bf16.gmra.mrb[0].mxu0 %v1164
          %v1488 = vpop.f32.mrb[0].mxu0
          %v1489 = vadd.f32 %v1227, %v1488
          %v1490 = vpop.f32.mrb[0].mxu0
          %v1491 = vadd.f32 %v1231, %v1490
          %v1492 = vpop.f32.mrb[0].mxu0
          %v1493 = vadd.f32 %v1227, %v1492
          %v1494 = vpop.f32.mrb[0].mxu0
          %v1495 = vadd.f32 %v1231, %v1494
          %1496 = vmatprep.mubr.bf16.mxu0 %v1085
          %1497 = vmatmul.mubr.bf16.gmra.mrb[0].mxu0 %v1165
          %v1498 = vpop.f32.mrb[0].mxu0
          %v1499 = vadd.f32 %v1227, %v1498
          %v1500 = vpop.f32.mrb[0].mxu0
          %v1501 = vadd.f32 %v1231, %v1500
          %v1502 = vpop.f32.mrb[0].mxu0
          %v1503 = vadd.f32 %v1227, %v1502
          %v1504 = vpop.f32.mrb[0].mxu0
          %v1505 = vadd.f32 %v1231, %v1504
          %1506 = vmatprep.mubr.bf16.mxu0 %v1086
          %1507 = vmatmul.mubr.bf16.gmra.mrb[0].mxu0 %v1166
          %v1508 = vpop.f32.mrb[0].mxu0
          %v1509 = vadd.f32 %v1227, %v1508
          %v1510 = vpop.f32.mrb[0].mxu0
          %v1511 = vadd.f32 %v1231, %v1510
          %v1512 = vpop.f32.mrb[0].mxu0
          %v1513 = vadd.f32 %v1227, %v1512
          %v1514 = vpop.f32.mrb[0].mxu0
          %v1515 = vadd.f32 %v1231, %v1514
          %1516 = vmatprep.mubr.bf16.mxu0 %v1087
          %1517 = vmatmul.mubr.bf16.gmra.mrb[0].mxu0 %v1167
          %v1518 = vpop.f32.mrb[0].mxu0
          %v1519 = vadd.f32 %v1227, %v1518
          %v1520 = vpop.f32.mrb[0].mxu0
          %v1521 = vadd.f32 %v1231, %v1520
          %v1522 = vpop.f32.mrb[0].mxu0
          %v1523 = vadd.f32 %v1227, %v1522
          %v1524 = vpop.f32.mrb[0].mxu0
          %v1525 = vadd.f32 %v1231, %v1524
          %1526 = vmatprep.mubr.bf16.mxu0 %v1088
          %1527 = vmatmul.mubr.bf16.gmra.mrb[0].mxu0 %v1168
          %v1528 = vpop.f32.mrb[0].mxu0
          %v1529 = vadd.f32 %v1227, %v1528
          %v1530 = vpop.f32.mrb[0].mxu0
          %v1531 = vadd.f32 %v1231, %v1530
          %v1532 = vpop.f32.mrb[0].mxu0
          %v1533 = vadd.f32 %v1227, %v1532
          %v1534 = vpop.f32.mrb[0].mxu0
          %v1535 = vadd.f32 %v1231, %v1534
          %1536 = vmatprep.mubr.bf16.mxu0 %v1089
          %1537 = vmatmul.mubr.bf16.gmra.mrb[0].mxu0 %v1169
          %v1538 = vpop.f32.mrb[0].mxu0
          %v1539 = vadd.f32 %v1227, %v1538
          %v1540 = vpop.f32.mrb[0].mxu0
          %v1541 = vadd.f32 %v1231, %v1540
          %v1542 = vpop.f32.mrb[0].mxu0
          %v1543 = vadd.f32 %v1227, %v1542
          %v1544 = vpop.f32.mrb[0].mxu0
          %v1545 = vadd.f32 %v1231, %v1544
          %1546 = vmatprep.mubr.bf16.mxu0 %v1090
          %1547 = vmatmul.mubr.bf16.gmra.mrb[0].mxu0 %v1170
          %v1548 = vpop.f32.mrb[0].mxu0
          %v1549 = vadd.f32 %v1227, %v1548
          %v1550 = vpop.f32.mrb[0].mxu0
          %v1551 = vadd.f32 %v1231, %v1550
          %v1552 = vpop.f32.mrb[0].mxu0
          %v1553 = vadd.f32 %v1227, %v1552
          %v1554 = vpop.f32.mrb[0].mxu0
          %v1555 = vadd.f32 %v1231, %v1554
          %1556 = vmatprep.mubr.bf16.mxu0 %v1091
          %1557 = vmatmul.mubr.bf16.gmra.mrb[0].mxu0 %v1171
          %v1558 = vpop.f32.mrb[0].mxu0
          %v1559 = vadd.f32 %v1227, %v1558
          %v1560 = vpop.f32.mrb[0].mxu0
          %v1561 = vadd.f32 %v1231, %v1560
          %v1562 = vpop.f32.mrb[0].mxu0
          %v1563 = vadd.f32 %v1227, %v1562
          %v1564 = vpop.f32.mrb[0].mxu0
          %v1565 = vadd.f32 %v1231, %v1564
          %1566 = vmatprep.mubr.bf16.mxu0 %v1092
          %1567 = vmatmul.mubr.bf16.gmra.mrb[0].mxu0 %v1172
          %v1568 = vpop.f32.mrb[0].mxu0
          %v1569 = vadd.f32 %v1227, %v1568
          %v1570 = vpop.f32.mrb[0].mxu0
          %v1571 = vadd.f32 %v1231, %v1570
          %v1572 = vpop.f32.mrb[0].mxu0
          %v1573 = vadd.f32 %v1227, %v1572
          %v1574 = vpop.f32.mrb[0].mxu0
          %v1575 = vadd.f32 %v1231, %v1574
          %1576 = vmatprep.mubr.bf16.mxu0 %v1093
          %1577 = vmatmul.mubr.bf16.gmra.mrb[0].mxu0 %v1173
          %v1578 = vpop.f32.mrb[0].mxu0
          %v1579 = vadd.f32 %v1227, %v1578
          %v1580 = vpop.f32.mrb[0].mxu0
          %v1581 = vadd.f32 %v1231, %v1580
          %v1582 = vpop.f32.mrb[0].mxu0
          %v1583 = vadd.f32 %v1227, %v1582
          %v1584 = vpop.f32.mrb[0].mxu0
          %v1585 = vadd.f32 %v1231, %v1584
          %1586 = vdwg.mxu0
          %v1587 = vmax.f32 %v1429, 0.0
          %v1588 = vmax.f32 %v1433, 0.0
          %v1589 = vmax.f32 %v1439, 0.0
          %v1590 = vmax.f32 %v1443, 0.0
          %v1591 = vmax.f32 %v1449, 0.0
          %v1592 = vmax.f32 %v1453, 0.0
          %v1593 = vmax.f32 %v1459, 0.0
          %v1594 = vmax.f32 %v1463, 0.0
          %v1595 = vmax.f32 %v1469, 0.0
          %v1596 = vmax.f32 %v1473, 0.0
          %v1597 = vmax.f32 %v1479, 0.0
          %v1598 = vmax.f32 %v1483, 0.0
          %v1599 = vmax.f32 %v1489, 0.0
          %v1600 = vmax.f32 %v1493, 0.0
          %v1601 = vmax.f32 %v1499, 0.0
          %v1602 = vmax.f32 %v1503, 0.0
          %v1603 = vmax.f32 %v1509, 0.0
          %v1604 = vmax.f32 %v1513, 0.0
          %v1605 = vmax.f32 %v1519, 0.0
          %v1606 = vmax.f32 %v1523, 0.0
          %v1607 = vmax.f32 %v1529, 0.0
          %v1608 = vmax.f32 %v1533, 0.0
          %v1609 = vmax.f32 %v1539, 0.0
          %v1610 = vmax.f32 %v1543, 0.0
          %v1611 = vmax.f32 %v1549, 0.0
          %v1612 = vmax.f32 %v1553, 0.0
          %v1613 = vmax.f32 %v1559, 0.0
          %v1614 = vmax.f32 %v1563, 0.0
          %v1615 = vmax.f32 %v1569, 0.0
          %v1616 = vmax.f32 %v1573, 0.0
          %v1617 = vmax.f32 %v1579, 0.0
          %v1618 = vmax.f32 %v1583, 0.0
          %v1619 = vadd.f32 %v1587, %v1431
          %v1620 = vadd.f32 %v1588, %v1435
          %v1621 = vadd.f32 %v1589, %v1441
          %v1622 = vadd.f32 %v1590, %v1445
          %v1623 = vadd.f32 %v1591, %v1451
          %v1624 = vadd.f32 %v1592, %v1455
          %v1625 = vadd.f32 %v1593, %v1461
          %v1626 = vadd.f32 %v1594, %v1465
          %v1627 = vadd.f32 %v1595, %v1471
          %v1628 = vadd.f32 %v1596, %v1475
          %v1629 = vadd.f32 %v1597, %v1481
          %v1630 = vadd.f32 %v1598, %v1485
          %v1631 = vadd.f32 %v1599, %v1491
          %v1632 = vadd.f32 %v1600, %v1495
          %v1633 = vadd.f32 %v1601, %v1501
          %v1634 = vadd.f32 %v1602, %v1505
          %v1635 = vadd.f32 %v1603, %v1511
          %v1636 = vadd.f32 %v1604, %v1515
          %v1637 = vadd.f32 %v1605, %v1521
          %v1638 = vadd.f32 %v1606, %v1525
          %v1639 = vadd.f32 %v1607, %v1531
          %v1640 = vadd.f32 %v1608, %v1535
          %v1641 = vadd.f32 %v1609, %v1541
          %v1642 = vadd.f32 %v1610, %v1545
          %v1643 = vadd.f32 %v1611, %v1551
          %v1644 = vadd.f32 %v1612, %v1555
          %v1645 = vadd.f32 %v1613, %v1561
          %v1646 = vadd.f32 %v1614, %v1565
          %v1647 = vadd.f32 %v1615, %v1571
          %v1648 = vadd.f32 %v1616, %v1575
          %v1649 = vadd.f32 %v1617, %v1581
          %v1650 = vadd.f32 %v1618, %v1585
          %v1651 = vpack.c.bf16 %v1588, %v1587
          %v1652 = vpack.c.bf16 %v1590, %v1589
          %v1653 = vpack.c.bf16 %v1592, %v1591
          %v1654 = vpack.c.bf16 %v1594, %v1593
          %v1655 = vpack.c.bf16 %v1596, %v1595
          %v1656 = vpack.c.bf16 %v1598, %v1597
          %v1657 = vpack.c.bf16 %v1600, %v1599
          %v1658 = vpack.c.bf16 %v1602, %v1601
          %v1659 = vpack.c.bf16 %v1604, %v1603
          %v1660 = vpack.c.bf16 %v1606, %v1605
          %v1661 = vpack.c.bf16 %v1608, %v1607
          %v1662 = vpack.c.bf16 %v1610, %v1609
          %v1663 = vpack.c.bf16 %v1612, %v1611
          %v1664 = vpack.c.bf16 %v1614, %v1613
          %v1665 = vpack.c.bf16 %v1616, %v1615
          %v1666 = vpack.c.bf16 %v1618, %v1617
          %v1683 = vunpack.c.l.b16 %v1651
          %v1684 = vunpack.c.h.b16 %v1651
          %v1685 = vunpack.c.l.b16 %v1652
          %v1686 = vunpack.c.h.b16 %v1652
          %v1687 = vunpack.c.l.b16 %v1653
          %v1688 = vunpack.c.h.b16 %v1653
          %v1689 = vunpack.c.l.b16 %v1654
          %v1690 = vunpack.c.h.b16 %v1654
          %v1691 = vunpack.c.l.b16 %v1655
          %v1692 = vunpack.c.h.b16 %v1655
          %v1693 = vunpack.c.l.b16 %v1656
          %v1694 = vunpack.c.h.b16 %v1656
          %v1695 = vunpack.c.l.b16 %v1657
          %v1696 = vunpack.c.h.b16 %v1657
          %v1697 = vunpack.c.l.b16 %v1658
          %v1698 = vunpack.c.h.b16 %v1658
          %v1699 = vunpack.c.l.b16 %v1659
          %v1700 = vunpack.c.h.b16 %v1659
          %v1701 = vunpack.c.l.b16 %v1660
          %v1702 = vunpack.c.h.b16 %v1660
          %v1703 = vunpack.c.l.b16 %v1661
          %v1704 = vunpack.c.h.b16 %v1661
          %v1705 = vunpack.c.l.b16 %v1662
          %v1706 = vunpack.c.h.b16 %v1662
          %v1707 = vunpack.c.l.b16 %v1663
          %v1708 = vunpack.c.h.b16 %v1663
          %v1709 = vunpack.c.l.b16 %v1664
          %v1710 = vunpack.c.h.b16 %v1664
          %v1711 = vunpack.c.l.b16 %v1665
          %v1712 = vunpack.c.h.b16 %v1665
          %v1713 = vunpack.c.l.b16 %v1666
          %v1714 = vunpack.c.h.b16 %v1666
          %v1715 = vpack.c.b16 %v1683, %v1683
          %v1716 = vpack.c.b16 %v1684, %v1684
          %v1717 = vpack.c.b16 %v1685, %v1685
          %v1718 = vpack.c.b16 %v1686, %v1686
          %v1719 = vpack.c.b16 %v1687, %v1687
          %v1720 = vpack.c.b16 %v1688, %v1688
          %v1721 = vpack.c.b16 %v1689, %v1689
          %v1722 = vpack.c.b16 %v1690, %v1690
          %v1723 = vpack.c.b16 %v1691, %v1691
          %v1724 = vpack.c.b16 %v1692, %v1692
          %v1725 = vpack.c.b16 %v1693, %v1693
          %v1726 = vpack.c.b16 %v1694, %v1694
          %v1727 = vpack.c.b16 %v1695, %v1695
          %v1728 = vpack.c.b16 %v1696, %v1696
          %v1729 = vpack.c.b16 %v1697, %v1697
          %v1730 = vpack.c.b16 %v1698, %v1698
          %v1731 = vpack.c.b16 %v1699, %v1699
          %v1732 = vpack.c.b16 %v1700, %v1700
          %v1733 = vpack.c.b16 %v1701, %v1701
          %v1734 = vpack.c.b16 %v1702, %v1702
          %v1735 = vpack.c.b16 %v1703, %v1703
          %v1736 = vpack.c.b16 %v1704, %v1704
          %v1737 = vpack.c.b16 %v1705, %v1705
          %v1738 = vpack.c.b16 %v1706, %v1706
          %v1739 = vpack.c.b16 %v1707, %v1707
          %v1740 = vpack.c.b16 %v1708, %v1708
          %v1741 = vpack.c.b16 %v1709, %v1709
          %v1742 = vpack.c.b16 %v1710, %v1710
          %v1743 = vpack.c.b16 %v1711, %v1711
          %v1744 = vpack.c.b16 %v1712, %v1712
          %v1745 = vpack.c.b16 %v1713, %v1713
          %v1746 = vpack.c.b16 %v1714, %v1714
          %1779 = vst [vmem:[%s382] sm:$0xf] %v1715
          %1780 = vst [vmem:[%s382 + $0x4] sm:$0xf] %v1716
          %1781 = vst [vmem:[%s382 + $0x8] sm:$0xf] %v1717
          %1782 = vst [vmem:[%s382 + $0xc] sm:$0xf] %v1718
          %1783 = vst [vmem:[%s382 + $0x10] sm:$0xf] %v1719
          %1784 = vst [vmem:[%s382 + $0x14] sm:$0xf] %v1720
          %1785 = vst [vmem:[%s382 + $0x18] sm:$0xf] %v1721
          %1786 = vst [vmem:[%s382 + $0x1c] sm:$0xf] %v1722
          %1787 = vst [vmem:[%s382 + $0x20] sm:$0xf] %v1723
          %1788 = vst [vmem:[%s382 + $0x24] sm:$0xf] %v1724
          %1789 = vst [vmem:[%s382 + $0x28] sm:$0xf] %v1725
          %1790 = vst [vmem:[%s382 + $0x2c] sm:$0xf] %v1726
          %1791 = vst [vmem:[%s382 + $0x30] sm:$0xf] %v1727
          %1792 = vst [vmem:[%s382 + $0x34] sm:$0xf] %v1728
          %1793 = vst [vmem:[%s382 + $0x38] sm:$0xf] %v1729
          %1794 = vst [vmem:[%s382 + $0x3c] sm:$0xf] %v1730
          %1795 = vst [vmem:[%s382 + $0x40] sm:$0xf] %v1731
          %1796 = vst [vmem:[%s382 + $0x44] sm:$0xf] %v1732
          %1797 = vst [vmem:[%s382 + $0x48] sm:$0xf] %v1733
          %1798 = vst [vmem:[%s382 + $0x4c] sm:$0xf] %v1734
          %1799 = vst [vmem:[%s382 + $0x50] sm:$0xf] %v1735
          %1800 = vst [vmem:[%s382 + $0x54] sm:$0xf] %v1736
          %1801 = vst [vmem:[%s382 + $0x58] sm:$0xf] %v1737
          %1802 = vst [vmem:[%s382 + $0x5c] sm:$0xf] %v1738
          %1803 = vst [vmem:[%s382 + $0x60] sm:$0xf] %v1739
          %1804 = vst [vmem:[%s382 + $0x64] sm:$0xf] %v1740
          %1805 = vst [vmem:[%s382 + $0x68] sm:$0xf] %v1741
          %1806 = vst [vmem:[%s382 + $0x6c] sm:$0xf] %v1742
          %1807 = vst [vmem:[%s382 + $0x70] sm:$0xf] %v1743
          %1808 = vst [vmem:[%s382 + $0x74] sm:$0xf] %v1744
          %1809 = vst [vmem:[%s382 + $0x78] sm:$0xf] %v1745
          %1810 = vst [vmem:[%s382 + $0x7c] sm:$0xf] %v1746
          %v1811 = vpack.c.bf16 %v1620, %v1619
          %v1812 = vpack.c.bf16 %v1622, %v1621
          %v1813 = vpack.c.bf16 %v1624, %v1623
          %v1814 = vpack.c.bf16 %v1626, %v1625
          %v1815 = vpack.c.bf16 %v1628, %v1627
          %v1816 = vpack.c.bf16 %v1630, %v1629
          %v1817 = vpack.c.bf16 %v1632, %v1631
          %v1818 = vpack.c.bf16 %v1634, %v1633
          %v1819 = vpack.c.bf16 %v1636, %v1635
          %v1820 = vpack.c.bf16 %v1638, %v1637
          %v1821 = vpack.c.bf16 %v1640, %v1639
          %v1822 = vpack.c.bf16 %v1642, %v1641
          %v1823 = vpack.c.bf16 %v1644, %v1643
          %v1824 = vpack.c.bf16 %v1646, %v1645
          %v1825 = vpack.c.bf16 %v1648, %v1647
          %v1826 = vpack.c.bf16 %v1650, %v1649
          %v1843 = vunpack.c.l.b16 %v1811
          %v1844 = vunpack.c.h.b16 %v1811
          %v1845 = vunpack.c.l.b16 %v1812
          %v1846 = vunpack.c.h.b16 %v1812
          %v1847 = vunpack.c.l.b16 %v1813
          %v1848 = vunpack.c.h.b16 %v1813
          %v1849 = vunpack.c.l.b16 %v1814
          %v1850 = vunpack.c.h.b16 %v1814
          %v1851 = vunpack.c.l.b16 %v1815
          %v1852 = vunpack.c.h.b16 %v1815
          %v1853 = vunpack.c.l.b16 %v1816
          %v1854 = vunpack.c.h.b16 %v1816
          %v1855 = vunpack.c.l.b16 %v1817
          %v1856 = vunpack.c.h.b16 %v1817
          %v1857 = vunpack.c.l.b16 %v1818
          %v1858 = vunpack.c.h.b16 %v1818
          %v1859 = vunpack.c.l.b16 %v1819
          %v1860 = vunpack.c.h.b16 %v1819
          %v1861 = vunpack.c.l.b16 %v1820
          %v1862 = vunpack.c.h.b16 %v1820
          %v1863 = vunpack.c.l.b16 %v1821
          %v1864 = vunpack.c.h.b16 %v1821
          %v1865 = vunpack.c.l.b16 %v1822
          %v1866 = vunpack.c.h.b16 %v1822
          %v1867 = vunpack.c.l.b16 %v1823
          %v1868 = vunpack.c.h.b16 %v1823
          %v1869 = vunpack.c.l.b16 %v1824
          %v1870 = vunpack.c.h.b16 %v1824
          %v1871 = vunpack.c.l.b16 %v1825
          %v1872 = vunpack.c.h.b16 %v1825
          %v1873 = vunpack.c.l.b16 %v1826
          %v1874 = vunpack.c.h.b16 %v1826
          %v1875 = vpack.c.b16 %v1843, %v1843
          %v1876 = vpack.c.b16 %v1844, %v1844
          %v1877 = vpack.c.b16 %v1845, %v1845
          %v1878 = vpack.c.b16 %v1846, %v1846
          %v1879 = vpack.c.b16 %v1847, %v1847
          %v1880 = vpack.c.b16 %v1848, %v1848
          %v1881 = vpack.c.b16 %v1849, %v1849
          %v1882 = vpack.c.b16 %v1850, %v1850
          %v1883 = vpack.c.b16 %v1851, %v1851
          %v1884 = vpack.c.b16 %v1852, %v1852
          %v1885 = vpack.c.b16 %v1853, %v1853
          %v1886 = vpack.c.b16 %v1854, %v1854
          %v1887 = vpack.c.b16 %v1855, %v1855
          %v1888 = vpack.c.b16 %v1856, %v1856
          %v1889 = vpack.c.b16 %v1857, %v1857
          %v1890 = vpack.c.b16 %v1858, %v1858
          %v1891 = vpack.c.b16 %v1859, %v1859
          %v1892 = vpack.c.b16 %v1860, %v1860
          %v1893 = vpack.c.b16 %v1861, %v1861
          %v1894 = vpack.c.b16 %v1862, %v1862
          %v1895 = vpack.c.b16 %v1863, %v1863
          %v1896 = vpack.c.b16 %v1864, %v1864
          %v1897 = vpack.c.b16 %v1865, %v1865
          %v1898 = vpack.c.b16 %v1866, %v1866
          %v1899 = vpack.c.b16 %v1867, %v1867
          %v1900 = vpack.c.b16 %v1868, %v1868
          %v1901 = vpack.c.b16 %v1869, %v1869
          %v1902 = vpack.c.b16 %v1870, %v1870
          %v1903 = vpack.c.b16 %v1871, %v1871
          %v1904 = vpack.c.b16 %v1872, %v1872
          %v1905 = vpack.c.b16 %v1873, %v1873
          %v1906 = vpack.c.b16 %v1874, %v1874
          %1939 = vst [vmem:[%s389] sm:$0xf] %v1875
          %1940 = vst [vmem:[%s389 + $0x4] sm:$0xf] %v1876
          %1941 = vst [vmem:[%s389 + $0x8] sm:$0xf] %v1877
          %1942 = vst [vmem:[%s389 + $0xc] sm:$0xf] %v1878
          %1943 = vst [vmem:[%s389 + $0x10] sm:$0xf] %v1879
          %1944 = vst [vmem:[%s389 + $0x14] sm:$0xf] %v1880
          %1945 = vst [vmem:[%s389 + $0x18] sm:$0xf] %v1881
          %1946 = vst [vmem:[%s389 + $0x1c] sm:$0xf] %v1882
          %1947 = vst [vmem:[%s389 + $0x20] sm:$0xf] %v1883
          %1948 = vst [vmem:[%s389 + $0x24] sm:$0xf] %v1884
          %1949 = vst [vmem:[%s389 + $0x28] sm:$0xf] %v1885
          %1950 = vst [vmem:[%s389 + $0x2c] sm:$0xf] %v1886
          %1951 = vst [vmem:[%s389 + $0x30] sm:$0xf] %v1887
          %1952 = vst [vmem:[%s389 + $0x34] sm:$0xf] %v1888
          %1953 = vst [vmem:[%s389 + $0x38] sm:$0xf] %v1889
          %1954 = vst [vmem:[%s389 + $0x3c] sm:$0xf] %v1890
          %1955 = vst [vmem:[%s389 + $0x40] sm:$0xf] %v1891
          %1956 = vst [vmem:[%s389 + $0x44] sm:$0xf] %v1892
          %1957 = vst [vmem:[%s389 + $0x48] sm:$0xf] %v1893
          %1958 = vst [vmem:[%s389 + $0x4c] sm:$0xf] %v1894
          %1959 = vst [vmem:[%s389 + $0x50] sm:$0xf] %v1895
          %1960 = vst [vmem:[%s389 + $0x54] sm:$0xf] %v1896
          %1961 = vst [vmem:[%s389 + $0x58] sm:$0xf] %v1897
          %1962 = vst [vmem:[%s389 + $0x5c] sm:$0xf] %v1898
          %1963 = vst [vmem:[%s389 + $0x60] sm:$0xf] %v1899
          %1964 = vst [vmem:[%s389 + $0x64] sm:$0xf] %v1900
          %1965 = vst [vmem:[%s389 + $0x68] sm:$0xf] %v1901
          %1966 = vst [vmem:[%s389 + $0x6c] sm:$0xf] %v1902
          %1967 = vst [vmem:[%s389 + $0x70] sm:$0xf] %v1903
          %1968 = vst [vmem:[%s389 + $0x74] sm:$0xf] %v1904
          %1969 = vst [vmem:[%s389 + $0x78] sm:$0xf] %v1905
          %1970 = vst [vmem:[%s389 + $0x7c] sm:$0xf] %v1906
        $region64: #{tpu_custom_call.1} parent=39 // pred_fallthru
          _
        %s1971 = sand.u32 %s173, 1
        %s1972 = scalar_lea.sflag [#allocation5], %s1971
        %s1973 = sand.u32 %s173, 1
        %s1974 = smul.addr %s1973, 128
        %s1975 = scalar_lea.vmem [#allocation11], %s1974
        %s1976 = sand.u32 %s199, 1
        %s1977 = scalar_lea.sflag [#allocation13], %s1976
        %s1978 = sand.u32 %s199, 1
        %s1979 = smul.addr %s1978, 128
        %s1980 = scalar_lea.vmem [#allocation12], %s1979
        // Predicated region
        $region65: #{tpu_custom_call.1} parent=39 // pred_check
          %p1981 = pneg %p183
        $region66: #{tpu_custom_call.1} parent=39 // pred_check_branch
          %1983 = sbr.rel (%p1981) target = $region68
        $region67: #{tpu_custom_call.1} parent=39 // pred_region
          %s1984 = smul.u32 32, %s35
          %s1986 = ssub.s32 2048, 2048
          %1987 = vsyncadd %s1972, %s1986
          %s1988 = smul.addr %s1984, 64
          %s1989 = scalar_lea.hbm %s5, %s1988
          %s1990 = sshll.u32 %s1975, 4
          %s1991 = int_to_ptr.vmem [resolvable:$true] %s1990
          %1996 = dma.vmem_to_hbm [thread:$0]  %s1991, 2048, %s1989, %s1972, 64, 64, 4
        $region68: #{tpu_custom_call.1} parent=39 // pred_fallthru
          _
        // Predicated region
        $region69: #{tpu_custom_call.1} parent=39 // pred_check
          %p1997 = pneg %p209
        $region70: #{tpu_custom_call.1} parent=39 // pred_check_branch
          %1999 = sbr.rel (%p1997) target = $region72
        $region71: #{tpu_custom_call.1} parent=39 // pred_region
          %s2000 = smul.u32 32, %s35
          %s2002 = ssub.s32 2048, 2048
          %2003 = vsyncadd %s1977, %s2002
          %s2004 = smul.addr %s2000, 64
          %s2005 = scalar_lea.hbm %s6, %s2004
          %s2006 = sshll.u32 %s1980, 4
          %s2007 = int_to_ptr.vmem [resolvable:$true] %s2006
          %2012 = dma.vmem_to_hbm [thread:$0]  %s2007, 2048, %s2005, %s1977, 64, 64, 4
        $region72: #{tpu_custom_call.1} parent=39 // pred_fallthru
          _
      $region40: #{tpu_custom_call.1} parent=5 // pred_fallthru
        _
      %p2013 = scmp.le.s32.totalorder 2, %s26
      // Predicated region
      $region73: #{tpu_custom_call.1} parent=5 // pred_check
        %p2014 = pneg %p2013
      $region74: #{tpu_custom_call.1} parent=5 // pred_check_branch
        %2016 = sbr.rel (%p2014) target = $region76
      $region75: #{tpu_custom_call.1} parent=5 // pred_region
        %s2017 = ssub.s32 %s26, 2
        // Predicated region
        $region77: #{tpu_custom_call.1} parent=75 // pred_check
          %p2018 = pneg %p189
        $region78: #{tpu_custom_call.1} parent=75 // pred_check_branch
          %2020 = sbr.rel (%p2018) target = $region80
        $region79: #{tpu_custom_call.1} parent=75 // pred_region
          %s2021 = sand.u32 %s174, 1
          %s2022 = scalar_lea.sflag [#allocation5], %s2021
          %s2023 = sand.u32 %s174, 1
          %s2024 = smul.addr %s2023, 128
          %s2025 = scalar_lea.vmem [#allocation11], %s2024
          %2026 = dma.done %s2022, 2048
        $region80: #{tpu_custom_call.1} parent=75 // pred_fallthru
          _
        // Predicated region
        $region81: #{tpu_custom_call.1} parent=75 // pred_check
          %p2027 = pneg %p215
        $region82: #{tpu_custom_call.1} parent=75 // pred_check_branch
          %2029 = sbr.rel (%p2027) target = $region84
        $region83: #{tpu_custom_call.1} parent=75 // pred_region
          %s2030 = sand.u32 %s200, 1
          %s2031 = scalar_lea.sflag [#allocation13], %s2030
          %s2032 = sand.u32 %s200, 1
          %s2033 = smul.addr %s2032, 128
          %s2034 = scalar_lea.vmem [#allocation12], %s2033
          %2035 = dma.done %s2031, 2048
        $region84: #{tpu_custom_call.1} parent=75 // pred_fallthru
          _
      $region76: #{tpu_custom_call.1} parent=5 // pred_fallthru
        _
    $region6: #{tpu_custom_call.1} parent=1 // loop_footer
      %s30 = sadd.s32 1, %s26
    $region7: #{tpu_custom_call.1} parent=1 // loop_footer_branch
      %25 = sbr.rel target = $region3
    $region8: #{tpu_custom_call.1} parent=1 // loop_exit
      _
    %2036 = vsyncpa [#allocation4], 1
    %s2037 = scalar_lea.sflag [#allocation4], 1
    %2038 = vsyncpa %s2037, 1
    %2039 = vsyncpa [#allocation7], 1
    %s2040 = scalar_lea.sflag [#allocation7], 1
    %2041 = vsyncpa %s2040, 1
    %2042 = vsyncpa [#allocation10], 1
    %2043 = vsyncpa [#allocation5], 1
    %s2044 = scalar_lea.sflag [#allocation5], 1
    %2045 = vsyncpa %s2044, 1
    %2046 = vsyncpa [#allocation13], 1
    %s2047 = scalar_lea.sflag [#allocation13], 1
    %2048 = vsyncpa %s2047, 1

</llo_original>
